<compile_context>
chip_gen: v5e
topology: v5e:2x2
jax: 0.10.0
libtpu: 0.0.40
codegen_flags: <defaults>
</compile_context>

<pallas_src>
import functools
import math

import jax
import jax.numpy as jnp
from jax.experimental import pallas as pl
from jax.experimental.pallas import tpu as pltpu


# ----------------------------- in-kernel helpers -----------------------------

def _gelu_tanh(x):
    c = math.sqrt(2.0 / math.pi)
    return 0.5 * x * (1.0 + jnp.tanh(c * (x + 0.044715 * x * x * x)))


# ------------------------------- fused kernel --------------------------------

def _make_kernel(B, S, F, H, dk, hd, hidden):
    m = S // H                         # rows of the projections per attention block
    NC = B * H                         # number of flat-head attention blocks
    r_kv, r_q, r_o, r_1, r_2 = 0, F, 2 * F, 2 * F + dk, 3 * F + dk   # weight-pack rows
    inv_n = 1.0 / float(S * F)
    eps = 1e-5
    bf16, f32 = jnp.bfloat16, jnp.float32

    def _ln_one(y):
        # LayerNorm over all S*F elements of one batch (fresh nn.LayerNorm:
        # gamma=1, beta=0).  Two-pass variance (review correctness note) and a
        # compile-time 1/N; rsqrt goes to the EUP.
        mu = jnp.sum(y) * inv_n
        d = y - mu
        var = jnp.sum(d * d) * inv_n
        return d * jax.lax.rsqrt(var + eps)

    def _ln(y):
        # Per-batch LayerNorm on the (B*S, F) row-stacked layout.
        return jnp.concatenate([_ln_one(y[b * S:(b + 1) * S, :]) for b in range(B)],
                               axis=0)

    def kernel(xq_ref, xv_ref, w_ref, b_ref, o_ref, blk_ref, ctx_ref):
        xq = xq_ref[...]               # (B*S, F) f32 — K/V source
        xv = xv_ref[...]               # (B*S, F) f32 — Q source + residual

        # --- Q and packed [K|V] projections: 2 MXU ops, bf16 operands, f32 acc ---
        # (softmax scale 1/sqrt(F) is folded into the packed wq / bq.)
        p_q = jnp.dot(xv.astype(bf16), w_ref[r_q:r_q + F, 0:dk],
                      preferred_element_type=f32) + b_ref[0:1, 0:dk]       # (B*S, dk)
        p_kv = jnp.dot(xq.astype(bf16), w_ref[r_kv:r_kv + F, 0:2 * dk],
                       preferred_element_type=f32)                          # (B*S, 2dk)
        p_k = p_kv[:, 0:dk] + b_ref[1:2, 0:dk]
        p_v = p_kv[:, dk:2 * dk] + b_ref[2:3, 0:dk]

        # --- flat-head attention blocks ------------------------------------------
        # Block c <-> rows [c*m, (c+1)*m) of the projections; its (S, hd) Q/K/V are
        # the H column slices of those rows stacked along rows.  Softmax attention
        # is invariant to this common re-ordering of a block's rows, so plain
        # static sub-tile copies replace the torch "scrambled" flat reshape.
        for c in range(NC):
            r0 = c * m
            for j in range(H):         # gather into scratch (vld/vst slots, off MXU path)
                blk_ref[c, j * m:(j + 1) * m, :] = \
                    p_q[r0:r0 + m, j * hd:(j + 1) * hd]
                blk_ref[c, S + j * m:S + (j + 1) * m, :] = \
                    p_k[r0:r0 + m, j * hd:(j + 1) * hd]
                blk_ref[c, 2 * S + j * m:2 * S + (j + 1) * m, :] = \
                    p_v[r0:r0 + m, j * hd:(j + 1) * hd]
            qb = blk_ref[c, 0:S, :].astype(bf16)           # (S, hd)
            kb = blk_ref[c, S:2 * S, :].astype(bf16)
            vb = blk_ref[c, 2 * S:3 * S, :].astype(bf16)
            # Unmasked per-block softmax attention (no user mask: the PyTorch
            # masked_fill result is discarded).
            s = jax.lax.dot_general(qb, kb, (((1,), (1,)), ((), ())),
                                    preferred_element_type=f32)            # (S, S)
            s = s - jnp.max(s, axis=-1, keepdims=True)
            p = jnp.exp(s)
            p = p * pl.reciprocal(jnp.sum(p, axis=-1, keepdims=True), approx=True)
            cb = jnp.dot(p.astype(bf16), vb, preferred_element_type=f32)   # (S, hd)
            for j in range(H):         # scatter back == inverse flat head-reshape
                ctx_ref[r0:r0 + m, j * hd:(j + 1) * hd] = cb[j * m:(j + 1) * m, :]

        # --- attention output projection -----------------------------------------
        attn = jnp.dot(ctx_ref[...].astype(bf16), w_ref[r_o:r_o + dk, 0:F],
                       preferred_element_type=f32) + b_ref[3:4, 0:F]       # (B*S, F)

        # --- Add_Norm #1 (dropout == identity in eval mode) ----------------------
        # TODO(synk): training-mode dropout would need pltpu.prng_seed/prng_random_bits.
        o1 = _ln(xv + attn)

        # --- Feed_Forward1: L2(gelu(L1(x))) ---------------------------------------
        h = _gelu_tanh(jnp.dot(o1.astype(bf16), w_ref[r_1:r_1 + F, 0:hidden],
                               preferred_element_type=f32) + b_ref[4:5, 0:hidden])
        ff = jnp.dot(h.astype(bf16), w_ref[r_2:r_2 + hidden, 0:F],
                     preferred_element_type=f32) + b_ref[5:6, 0:F]

        # --- Add_Norm #2 + final residual -----------------------------------------
        o_ref[...] = _ln(o1 + ff) + xv

    return kernel


# --------------------------------- wrapper -----------------------------------

@functools.partial(jax.jit, static_argnums=3)
def decoder_forward(q, v, params, n_heads):
    B, S, F = q.shape
    H = n_heads
    dk = params['wq'].shape[1]          # dim_k == dim_v
    hidden = params['w1'].shape[1]
    assert dk % H == 0 and S % H == 0
    hd = dk // H
    scale = 1.0 / math.sqrt(F)          # norm_fact = 1/sqrt(d_model)

    # ---- one-time layout plumbing: pack ALL constants into 2 arrays ----------
    CW = max(2 * dk, F, hidden)
    RW = 3 * F + dk + hidden
    W = jnp.zeros((RW, CW), jnp.float32)
    W = W.at[0:F, 0:dk].set(params['wk'])                       # [wk | wv] packed
    W = W.at[0:F, dk:2 * dk].set(params['wv'])
    W = W.at[F:2 * F, 0:dk].set(params['wq'] * scale)           # scale folded in
    W = W.at[2 * F:2 * F + dk, 0:F].set(params['wo'])
    W = W.at[2 * F + dk:3 * F + dk, 0:hidden].set(params['w1'])
    W = W.at[3 * F + dk:RW, 0:F].set(params['w2'])
    W = W.astype(jnp.bfloat16)                                  # bf16 MXU operands

    Bp = jnp.zeros((8, CW), jnp.float32)                        # biases stay f32
    Bp = Bp.at[0, 0:dk].set(params['bq'][0] * scale)
    Bp = Bp.at[1, 0:dk].set(params['bk'][0])
    Bp = Bp.at[2, 0:dk].set(params['bv'][0])
    Bp = Bp.at[3, 0:F].set(params['bo'][0])
    Bp = Bp.at[4, 0:hidden].set(params['b1'][0])
    Bp = Bp.at[5, 0:F].set(params['b2'][0])

    xq = q.reshape(B * S, F)            # contiguous: free metadata reshape
    xv = v.reshape(B * S, F)

    kernel = _make_kernel(B, S, F, H, dk, hd, hidden)

    def full(shape):
        return pl.BlockSpec(shape, lambda i: (0,) * len(shape))

    out2 = pl.pallas_call(
        kernel,
        out_shape=jax.ShapeDtypeStruct((B * S, F), jnp.float32),
        grid=(1,),                      # single step: both batches row-stacked
        in_specs=[full((B * S, F)), full((B * S, F)),
                  full((RW, CW)), full((8, CW))],
        out_specs=full((B * S, F)),
        scratch_shapes=[
            pltpu.VMEM((B * H, 3 * S, hd), jnp.float32),   # per-block Q/K/V staging
            pltpu.VMEM((B * S, dk), jnp.float32),          # re-assembled context
        ],
        compiler_params=pltpu.CompilerParams(dimension_semantics=("arbitrary",)),
    )(xq, xv, W, Bp)

    return out2.reshape(B, S, F)


# ------------------------------ param init / ref ------------------------------

def _init_linear(key, fan_in, fan_out):
    # PyTorch nn.Linear default: U(-1/sqrt(fan_in), 1/sqrt(fan_in)); weight stored
    # transposed as (in, out) so the kernel computes x @ W.
    kw, kb = jax.random.split(key)
    bound = 1.0 / math.sqrt(fan_in)
    w = jax.random.uniform(kw, (fan_in, fan_out), jnp.float32, -bound, bound)
    b = jax.random.uniform(kb, (1, fan_out), jnp.float32, -bound, bound)
    return w, b


def _reference(q, v, p, n_heads):
    # Pure-JAX (f32) re-statement of the PyTorch forward (eval mode).
    B, S, F = q.shape
    dk = p['wq'].shape[1]
    hd = dk // n_heads

    def ln(x):
        mu = jnp.mean(x, axis=(1, 2), keepdims=True)
        var = jnp.mean((x - mu) ** 2, axis=(1, 2), keepdims=True)
        return (x - mu) / jnp.sqrt(var + 1e-5)

    Qp = v @ p['wq'] + p['bq']
    Kp = q @ p['wk'] + p['bk']
    Vp = q @ p['wv'] + p['bv']
    Q4 = Qp.reshape(n_heads, B, S, hd)
    K4 = Kp.reshape(n_heads, B, S, hd)
    V4 = Vp.reshape(n_heads, B, S, hd)
    s = jnp.einsum('hbqd,hbkd->hbqk', Q4, K4) * (1.0 / math.sqrt(F))
    a = jax.nn.softmax(s, axis=-1)
    ctx = jnp.einsum('hbqk,hbkd->hbqd', a, V4).reshape(B, S, dk)
    attn_out = ctx @ p['wo'] + p['bo']
    o1 = ln(v + attn_out)
    h = _gelu_tanh(o1 @ p['w1'] + p['b1'])
    ff = h @ p['w2'] + p['b2']
    o2 = ln(o1 + ff)
    return o2 + v


# ----------------------------------- main -------------------------------------

if __name__ == "__main__":
    # Small shapes consistent with Decoder(dim_seq, dim_fea, n_heads, hidden).
    B, S, F, H, HIDDEN = 2, 8, 32, 2, 32
    dk = F // H                        # dim_k == dim_v
    assert dk % H == 0                 # matches the module's assertion

    key = jax.random.PRNGKey(0)
    kq, kv, k1, k2, k3, k4, k5, k6 = jax.random.split(key, 8)

    q_in = jax.random.normal(kq, (B, S, F), jnp.float32)
    v_in = jax.random.normal(kv, (B, S, F), jnp.float32)

    wq, bq = _init_linear(k1, F, dk)
    wk, bk = _init_linear(k2, F, dk)
    wv, bv = _init_linear(k3, F, dk)
    wo, bo = _init_linear(k4, dk, F)
    w1, b1 = _init_linear(k5, F, HIDDEN)
    w2, b2 = _init_linear(k6, HIDDEN, F)
    params = dict(wq=wq, bq=bq, wk=wk, bk=bk, wv=wv, bv=bv,
                  wo=wo, bo=bo, w1=w1, b1=b1, w2=w2, b2=b2)

    out = decoder_forward(q_in, v_in, params, H)
    out = jax.block_until_ready(out)

    ref = _reference(q_in, v_in, params, H)
    assert out.shape == (B, S, F)

    # bf16 MXU operands (per the performance review) -> tolerance loosened
    # DELIBERATELY vs the old all-f32 version (was 1e-4); typical |err| ~1e-3.
    err = jnp.abs(out - ref)
    assert jnp.allclose(out, ref, atol=5e-2, rtol=5e-2), float(jnp.max(err))
    assert float(jnp.mean(err)) < 1e-2, float(jnp.mean(err))

    print("KERNEL_OK")
</pallas_src>

<mosaic_0001>
module attributes {stable_mosaic.version = 11 : i64} {
  func.func @kernel(%arg0: i32, %arg1: memref<16x32xf32, #tpu.memory_space<vmem>>, %arg2: memref<16x32xf32, #tpu.memory_space<vmem>>, %arg3: memref<144x32xbf16, #tpu.memory_space<vmem>>, %arg4: memref<8x32xf32, #tpu.memory_space<vmem>>, %arg5: memref<16x32xf32, #tpu.memory_space<vmem>>, %arg6: memref<4x24x8xf32, #tpu.memory_space<vmem>>, %arg7: memref<16x16xf32, #tpu.memory_space<vmem>>) attributes {dimension_semantics = [#tpu.dimension_semantics<arbitrary>], iteration_bounds = array<i64: 1>, scalar_prefetch = 0 : i64, scratch_operands = 2 : i64, tpu.core_type = #tpu.core_type<tc>, window_params = [{pipeline_mode = #tpu.pipeline_mode<synchronous>, transform_indices = @transform_0, window_bounds = array<i64: 16, 32>}, {pipeline_mode = #tpu.pipeline_mode<synchronous>, transform_indices = @transform_1, window_bounds = array<i64: 16, 32>}, {pipeline_mode = #tpu.pipeline_mode<synchronous>, transform_indices = @transform_2, window_bounds = array<i64: 144, 32>}, {pipeline_mode = #tpu.pipeline_mode<synchronous>, transform_indices = @transform_3, window_bounds = array<i64: 8, 32>}, {pipeline_mode = #tpu.pipeline_mode<synchronous>, transform_indices = @transform_4, window_bounds = array<i64: 16, 32>}]} {
    %c0 = arith.constant 0 : index
    %c0_0 = arith.constant 0 : index
    %0 = vector.load %arg1[%c0, %c0_0] : memref<16x32xf32, #tpu.memory_space<vmem>>, vector<16x32xf32>
    %c0_1 = arith.constant 0 : index
    %c0_2 = arith.constant 0 : index
    %1 = vector.load %arg2[%c0_1, %c0_2] : memref<16x32xf32, #tpu.memory_space<vmem>>, vector<16x32xf32>
    %2 = arith.truncf %1 : vector<16x32xf32> to vector<16x32xbf16>
    %c32 = arith.constant 32 : index
    %c0_3 = arith.constant 0 : index
    %3 = vector.load %arg3[%c32, %c0_3] : memref<144x32xbf16, #tpu.memory_space<vmem>>, vector<32x16xbf16>
    %cst = arith.constant dense<0.000000e+00> : vector<16x16xf32>
    %4 = tpu.matmul %2, %3, %cst {dimension_numbers = #tpu.dot_dimension_numbers<[1], [0], [0], [1], [0, 0, 1, 1], [], []>} : vector<16x32xbf16>, vector<32x16xbf16>, vector<16x16xf32> -> vector<16x16xf32>
    %c0_4 = arith.constant 0 : index
    %c0_5 = arith.constant 0 : index
    %5 = vector.load %arg4[%c0_4, %c0_5] : memref<8x32xf32, #tpu.memory_space<vmem>>, vector<1x16xf32>
    %6 = vector.broadcast %5 : vector<1x16xf32> to vector<16x16xf32>
    %7 = arith.addf %4, %6 : vector<16x16xf32>
    %8 = arith.truncf %0 : vector<16x32xf32> to vector<16x32xbf16>
    %c0_6 = arith.constant 0 : index
    %c0_7 = arith.constant 0 : index
    %9 = vector.load %arg3[%c0_6, %c0_7] : memref<144x32xbf16, #tpu.memory_space<vmem>>, vector<32x32xbf16>
    %cst_8 = arith.constant dense<0.000000e+00> : vector<16x32xf32>
    %10 = tpu.matmul %8, %9, %cst_8 {dimension_numbers = #tpu.dot_dimension_numbers<[1], [0], [0], [1], [0, 0, 1, 1], [], []>} : vector<16x32xbf16>, vector<32x32xbf16>, vector<16x32xf32> -> vector<16x32xf32>
    %11 = vector.extract_strided_slice %10 {offsets = [0, 0], sizes = [16, 16], strides = [1, 1]} : vector<16x32xf32> to vector<16x16xf32>
    %c1 = arith.constant 1 : index
    %c0_9 = arith.constant 0 : index
    %12 = vector.load %arg4[%c1, %c0_9] : memref<8x32xf32, #tpu.memory_space<vmem>>, vector<1x16xf32>
    %13 = vector.broadcast %12 : vector<1x16xf32> to vector<16x16xf32>
    %14 = arith.addf %11, %13 : vector<16x16xf32>
    %15 = vector.extract_strided_slice %10 {offsets = [0, 16], sizes = [16, 16], strides = [1, 1]} : vector<16x32xf32> to vector<16x16xf32>
    %c2 = arith.constant 2 : index
    %c0_10 = arith.constant 0 : index
    %16 = vector.load %arg4[%c2, %c0_10] : memref<8x32xf32, #tpu.memory_space<vmem>>, vector<1x16xf32>
    %17 = vector.broadcast %16 : vector<1x16xf32> to vector<16x16xf32>
    %18 = arith.addf %15, %17 : vector<16x16xf32>
    %19 = vector.extract_strided_slice %7 {offsets = [0, 0], sizes = [4, 8], strides = [1, 1]} : vector<16x16xf32> to vector<4x8xf32>
    %c0_11 = arith.constant 0 : index
    %c0_12 = arith.constant 0 : index
    %c0_13 = arith.constant 0 : index
    %20 = vector.load %arg6[%c0_11, %c0_12, %c0_13] : memref<4x24x8xf32, #tpu.memory_space<vmem>>, vector<1x4x8xf32>
    %21 = vector.shape_cast %20 : vector<1x4x8xf32> to vector<4x8xf32>
    %22 = vector.shape_cast %19 : vector<4x8xf32> to vector<1x4x8xf32>
    tpu.vector_store %arg6[%c0_11, %c0_12, %c0_13], %22 {strides = array<i32>} : memref<4x24x8xf32, #tpu.memory_space<vmem>>, vector<1x4x8xf32>,
    %23 = vector.extract_strided_slice %14 {offsets = [0, 0], sizes = [4, 8], strides = [1, 1]} : vector<16x16xf32> to vector<4x8xf32>
    %c0_14 = arith.constant 0 : index
    %c8 = arith.constant 8 : index
    %c0_15 = arith.constant 0 : index
    %24 = vector.load %arg6[%c0_14, %c8, %c0_15] : memref<4x24x8xf32, #tpu.memory_space<vmem>>, vector<1x4x8xf32>
    %25 = vector.shape_cast %24 : vector<1x4x8xf32> to vector<4x8xf32>
    %26 = vector.shape_cast %23 : vector<4x8xf32> to vector<1x4x8xf32>
    tpu.vector_store %arg6[%c0_14, %c8, %c0_15], %26 {strides = array<i32>} : memref<4x24x8xf32, #tpu.memory_space<vmem>>, vector<1x4x8xf32>,
    %27 = vector.extract_strided_slice %18 {offsets = [0, 0], sizes = [4, 8], strides = [1, 1]} : vector<16x16xf32> to vector<4x8xf32>
    %c0_16 = arith.constant 0 : index
    %c16 = arith.constant 16 : index
    %c0_17 = arith.constant 0 : index
    %28 = vector.load %arg6[%c0_16, %c16, %c0_17] : memref<4x24x8xf32, #tpu.memory_space<vmem>>, vector<1x4x8xf32>
    %29 = vector.shape_cast %28 : vector<1x4x8xf32> to vector<4x8xf32>
    %30 = vector.shape_cast %27 : vector<4x8xf32> to vector<1x4x8xf32>
    tpu.vector_store %arg6[%c0_16, %c16, %c0_17], %30 {strides = array<i32>} : memref<4x24x8xf32, #tpu.memory_space<vmem>>, vector<1x4x8xf32>,
    %31 = vector.extract_strided_slice %7 {offsets = [0, 8], sizes = [4, 8], strides = [1, 1]} : vector<16x16xf32> to vector<4x8xf32>
    %c0_18 = arith.constant 0 : index
    %c4 = arith.constant 4 : index
    %c0_19 = arith.constant 0 : index
    %32 = vector.load %arg6[%c0_18, %c4, %c0_19] : memref<4x24x8xf32, #tpu.memory_space<vmem>>, vector<1x4x8xf32>
    %33 = vector.shape_cast %32 : vector<1x4x8xf32> to vector<4x8xf32>
    %34 = vector.shape_cast %31 : vector<4x8xf32> to vector<1x4x8xf32>
    tpu.vector_store %arg6[%c0_18, %c4, %c0_19], %34 {strides = array<i32>} : memref<4x24x8xf32, #tpu.memory_space<vmem>>, vector<1x4x8xf32>,
    %35 = vector.extract_strided_slice %14 {offsets = [0, 8], sizes = [4, 8], strides = [1, 1]} : vector<16x16xf32> to vector<4x8xf32>
    %c0_20 = arith.constant 0 : index
    %c12 = arith.constant 12 : index
    %c0_21 = arith.constant 0 : index
    %36 = vector.load %arg6[%c0_20, %c12, %c0_21] : memref<4x24x8xf32, #tpu.memory_space<vmem>>, vector<1x4x8xf32>
    %37 = vector.shape_cast %36 : vector<1x4x8xf32> to vector<4x8xf32>
    %38 = vector.shape_cast %35 : vector<4x8xf32> to vector<1x4x8xf32>
    tpu.vector_store %arg6[%c0_20, %c12, %c0_21], %38 {strides = array<i32>} : memref<4x24x8xf32, #tpu.memory_space<vmem>>, vector<1x4x8xf32>,
    %39 = vector.extract_strided_slice %18 {offsets = [0, 8], sizes = [4, 8], strides = [1, 1]} : vector<16x16xf32> to vector<4x8xf32>
    %c0_22 = arith.constant 0 : index
    %c20 = arith.constant 20 : index
    %c0_23 = arith.constant 0 : index
    %40 = vector.load %arg6[%c0_22, %c20, %c0_23] : memref<4x24x8xf32, #tpu.memory_space<vmem>>, vector<1x4x8xf32>
    %41 = vector.shape_cast %40 : vector<1x4x8xf32> to vector<4x8xf32>
    %42 = vector.shape_cast %39 : vector<4x8xf32> to vector<1x4x8xf32>
    tpu.vector_store %arg6[%c0_22, %c20, %c0_23], %42 {strides = array<i32>} : memref<4x24x8xf32, #tpu.memory_space<vmem>>, vector<1x4x8xf32>,
    %c0_24 = arith.constant 0 : index
    %c0_25 = arith.constant 0 : index
    %c0_26 = arith.constant 0 : index
    %43 = vector.load %arg6[%c0_24, %c0_25, %c0_26] : memref<4x24x8xf32, #tpu.memory_space<vmem>>, vector<1x8x8xf32>
    %44 = vector.shape_cast %43 : vector<1x8x8xf32> to vector<8x8xf32>
    %45 = arith.truncf %44 : vector<8x8xf32> to vector<8x8xbf16>
    %c0_27 = arith.constant 0 : index
    %c8_28 = arith.constant 8 : index
    %c0_29 = arith.constant 0 : index
    %46 = vector.load %arg6[%c0_27, %c8_28, %c0_29] : memref<4x24x8xf32, #tpu.memory_space<vmem>>, vector<1x8x8xf32>
    %47 = vector.shape_cast %46 : vector<1x8x8xf32> to vector<8x8xf32>
    %48 = arith.truncf %47 : vector<8x8xf32> to vector<8x8xbf16>
    %c0_30 = arith.constant 0 : index
    %c16_31 = arith.constant 16 : index
    %c0_32 = arith.constant 0 : index
    %49 = vector.load %arg6[%c0_30, %c16_31, %c0_32] : memref<4x24x8xf32, #tpu.memory_space<vmem>>, vector<1x8x8xf32>
    %50 = vector.shape_cast %49 : vector<1x8x8xf32> to vector<8x8xf32>
    %51 = arith.truncf %50 : vector<8x8xf32> to vector<8x8xbf16>
    %cst_33 = arith.constant dense<0.000000e+00> : vector<8x8xf32>
    %52 = tpu.matmul %45, %48, %cst_33 {dimension_numbers = #tpu.dot_dimension_numbers<[1], [1], [0], [0], [0, 0, 1, 0], [], []>} : vector<8x8xbf16>, vector<8x8xbf16>, vector<8x8xf32> -> vector<8x8xf32>
    %cst_34 = arith.constant dense<0xFF800000> : vector<8xf32>
    %53 = vector.multi_reduction <maximumf>, %52, %cst_34 [1] : vector<8x8xf32> to vector<8xf32>
    %54 = vector.shape_cast %53 : vector<8xf32> to vector<8x1xf32>
    %55 = vector.broadcast %54 : vector<8x1xf32> to vector<8x8xf32>
    %56 = arith.subf %52, %55 : vector<8x8xf32>
    %57 = math.exp %56 : vector<8x8xf32>
    %cst_35 = arith.constant dense<0.000000e+00> : vector<8xf32>
    %58 = vector.multi_reduction <add>, %57, %cst_35 [1] : vector<8x8xf32> to vector<8xf32>
    %59 = vector.shape_cast %58 : vector<8xf32> to vector<8x1xf32>
    %60 = tpu.reciprocal %59 {approx = true} : vector<8x1xf32> -> vector<8x1xf32>
    %61 = vector.broadcast %60 : vector<8x1xf32> to vector<8x8xf32>
    %62 = arith.mulf %57, %61 : vector<8x8xf32>
    %63 = arith.truncf %62 : vector<8x8xf32> to vector<8x8xbf16>
    %cst_36 = arith.constant dense<0.000000e+00> : vector<8x8xf32>
    %64 = tpu.matmul %63, %51, %cst_36 {dimension_numbers = #tpu.dot_dimension_numbers<[1], [0], [0], [1], [0, 0, 1, 1], [], []>} : vector<8x8xbf16>, vector<8x8xbf16>, vector<8x8xf32> -> vector<8x8xf32>
    %65 = vector.extract_strided_slice %64 {offsets = [0, 0], sizes = [4, 8], strides = [1, 1]} : vector<8x8xf32> to vector<4x8xf32>
    %c0_37 = arith.constant 0 : index
    %c0_38 = arith.constant 0 : index
    %66 = vector.load %arg7[%c0_37, %c0_38] : memref<16x16xf32, #tpu.memory_space<vmem>>, vector<4x8xf32>
    tpu.vector_store %arg7[%c0_37, %c0_38], %65 {strides = array<i32>} : memref<16x16xf32, #tpu.memory_space<vmem>>, vector<4x8xf32>,
    %67 = vector.extract_strided_slice %64 {offsets = [4, 0], sizes = [4, 8], strides = [1, 1]} : vector<8x8xf32> to vector<4x8xf32>
    %c0_39 = arith.constant 0 : index
    %c8_40 = arith.constant 8 : index
    %68 = vector.load %arg7[%c0_39, %c8_40] : memref<16x16xf32, #tpu.memory_space<vmem>>, vector<4x8xf32>
    tpu.vector_store %arg7[%c0_39, %c8_40], %67 {strides = array<i32>} : memref<16x16xf32, #tpu.memory_space<vmem>>, vector<4x8xf32>,
    %69 = vector.extract_strided_slice %7 {offsets = [4, 0], sizes = [4, 8], strides = [1, 1]} : vector<16x16xf32> to vector<4x8xf32>
    %c1_41 = arith.constant 1 : index
    %c0_42 = arith.constant 0 : index
    %c0_43 = arith.constant 0 : index
    %70 = vector.load %arg6[%c1_41, %c0_42, %c0_43] : memref<4x24x8xf32, #tpu.memory_space<vmem>>, vector<1x4x8xf32>
    %71 = vector.shape_cast %70 : vector<1x4x8xf32> to vector<4x8xf32>
    %72 = vector.shape_cast %69 : vector<4x8xf32> to vector<1x4x8xf32>
    tpu.vector_store %arg6[%c1_41, %c0_42, %c0_43], %72 {strides = array<i32>} : memref<4x24x8xf32, #tpu.memory_space<vmem>>, vector<1x4x8xf32>,
    %73 = vector.extract_strided_slice %14 {offsets = [4, 0], sizes = [4, 8], strides = [1, 1]} : vector<16x16xf32> to vector<4x8xf32>
    %c1_44 = arith.constant 1 : index
    %c8_45 = arith.constant 8 : index
    %c0_46 = arith.constant 0 : index
    %74 = vector.load %arg6[%c1_44, %c8_45, %c0_46] : memref<4x24x8xf32, #tpu.memory_space<vmem>>, vector<1x4x8xf32>
    %75 = vector.shape_cast %74 : vector<1x4x8xf32> to vector<4x8xf32>
    %76 = vector.shape_cast %73 : vector<4x8xf32> to vector<1x4x8xf32>
    tpu.vector_store %arg6[%c1_44, %c8_45, %c0_46], %76 {strides = array<i32>} : memref<4x24x8xf32, #tpu.memory_space<vmem>>, vector<1x4x8xf32>,
    %77 = vector.extract_strided_slice %18 {offsets = [4, 0], sizes = [4, 8], strides = [1, 1]} : vector<16x16xf32> to vector<4x8xf32>
    %c1_47 = arith.constant 1 : index
    %c16_48 = arith.constant 16 : index
    %c0_49 = arith.constant 0 : index
    %78 = vector.load %arg6[%c1_47, %c16_48, %c0_49] : memref<4x24x8xf32, #tpu.memory_space<vmem>>, vector<1x4x8xf32>
    %79 = vector.shape_cast %78 : vector<1x4x8xf32> to vector<4x8xf32>
    %80 = vector.shape_cast %77 : vector<4x8xf32> to vector<1x4x8xf32>
    tpu.vector_store %arg6[%c1_47, %c16_48, %c0_49], %80 {strides = array<i32>} : memref<4x24x8xf32, #tpu.memory_space<vmem>>, vector<1x4x8xf32>,
    %81 = vector.extract_strided_slice %7 {offsets = [4, 8], sizes = [4, 8], strides = [1, 1]} : vector<16x16xf32> to vector<4x8xf32>
    %c1_50 = arith.constant 1 : index
    %c4_51 = arith.constant 4 : index
    %c0_52 = arith.constant 0 : index
    %82 = vector.load %arg6[%c1_50, %c4_51, %c0_52] : memref<4x24x8xf32, #tpu.memory_space<vmem>>, vector<1x4x8xf32>
    %83 = vector.shape_cast %82 : vector<1x4x8xf32> to vector<4x8xf32>
    %84 = vector.shape_cast %81 : vector<4x8xf32> to vector<1x4x8xf32>
    tpu.vector_store %arg6[%c1_50, %c4_51, %c0_52], %84 {strides = array<i32>} : memref<4x24x8xf32, #tpu.memory_space<vmem>>, vector<1x4x8xf32>,
    %85 = vector.extract_strided_slice %14 {offsets = [4, 8], sizes = [4, 8], strides = [1, 1]} : vector<16x16xf32> to vector<4x8xf32>
    %c1_53 = arith.constant 1 : index
    %c12_54 = arith.constant 12 : index
    %c0_55 = arith.constant 0 : index
    %86 = vector.load %arg6[%c1_53, %c12_54, %c0_55] : memref<4x24x8xf32, #tpu.memory_space<vmem>>, vector<1x4x8xf32>
    %87 = vector.shape_cast %86 : vector<1x4x8xf32> to vector<4x8xf32>
    %88 = vector.shape_cast %85 : vector<4x8xf32> to vector<1x4x8xf32>
    tpu.vector_store %arg6[%c1_53, %c12_54, %c0_55], %88 {strides = array<i32>} : memref<4x24x8xf32, #tpu.memory_space<vmem>>, vector<1x4x8xf32>,
    %89 = vector.extract_strided_slice %18 {offsets = [4, 8], sizes = [4, 8], strides = [1, 1]} : vector<16x16xf32> to vector<4x8xf32>
    %c1_56 = arith.constant 1 : index
    %c20_57 = arith.constant 20 : index
    %c0_58 = arith.constant 0 : index
    %90 = vector.load %arg6[%c1_56, %c20_57, %c0_58] : memref<4x24x8xf32, #tpu.memory_space<vmem>>, vector<1x4x8xf32>
    %91 = vector.shape_cast %90 : vector<1x4x8xf32> to vector<4x8xf32>
    %92 = vector.shape_cast %89 : vector<4x8xf32> to vector<1x4x8xf32>
    tpu.vector_store %arg6[%c1_56, %c20_57, %c0_58], %92 {strides = array<i32>} : memref<4x24x8xf32, #tpu.memory_space<vmem>>, vector<1x4x8xf32>,
    %c1_59 = arith.constant 1 : index
    %c0_60 = arith.constant 0 : index
    %c0_61 = arith.constant 0 : index
    %93 = vector.load %arg6[%c1_59, %c0_60, %c0_61] : memref<4x24x8xf32, #tpu.memory_space<vmem>>, vector<1x8x8xf32>
    %94 = vector.shape_cast %93 : vector<1x8x8xf32> to vector<8x8xf32>
    %95 = arith.truncf %94 : vector<8x8xf32> to vector<8x8xbf16>
    %c1_62 = arith.constant 1 : index
    %c8_63 = arith.constant 8 : index
    %c0_64 = arith.constant 0 : index
    %96 = vector.load %arg6[%c1_62, %c8_63, %c0_64] : memref<4x24x8xf32, #tpu.memory_space<vmem>>, vector<1x8x8xf32>
    %97 = vector.shape_cast %96 : vector<1x8x8xf32> to vector<8x8xf32>
    %98 = arith.truncf %97 : vector<8x8xf32> to vector<8x8xbf16>
    %c1_65 = arith.constant 1 : index
    %c16_66 = arith.constant 16 : index
    %c0_67 = arith.constant 0 : index
    %99 = vector.load %arg6[%c1_65, %c16_66, %c0_67] : memref<4x24x8xf32, #tpu.memory_space<vmem>>, vector<1x8x8xf32>
    %100 = vector.shape_cast %99 : vector<1x8x8xf32> to vector<8x8xf32>
    %101 = arith.truncf %100 : vector<8x8xf32> to vector<8x8xbf16>
    %cst_68 = arith.constant dense<0.000000e+00> : vector<8x8xf32>
    %102 = tpu.matmul %95, %98, %cst_68 {dimension_numbers = #tpu.dot_dimension_numbers<[1], [1], [0], [0], [0, 0, 1, 0], [], []>} : vector<8x8xbf16>, vector<8x8xbf16>, vector<8x8xf32> -> vector<8x8xf32>
    %cst_69 = arith.constant dense<0xFF800000> : vector<8xf32>
    %103 = vector.multi_reduction <maximumf>, %102, %cst_69 [1] : vector<8x8xf32> to vector<8xf32>
    %104 = vector.shape_cast %103 : vector<8xf32> to vector<8x1xf32>
    %105 = vector.broadcast %104 : vector<8x1xf32> to vector<8x8xf32>
    %106 = arith.subf %102, %105 : vector<8x8xf32>
    %107 = math.exp %106 : vector<8x8xf32>
    %cst_70 = arith.constant dense<0.000000e+00> : vector<8xf32>
    %108 = vector.multi_reduction <add>, %107, %cst_70 [1] : vector<8x8xf32> to vector<8xf32>
    %109 = vector.shape_cast %108 : vector<8xf32> to vector<8x1xf32>
    %110 = tpu.reciprocal %109 {approx = true} : vector<8x1xf32> -> vector<8x1xf32>
    %111 = vector.broadcast %110 : vector<8x1xf32> to vector<8x8xf32>
    %112 = arith.mulf %107, %111 : vector<8x8xf32>
    %113 = arith.truncf %112 : vector<8x8xf32> to vector<8x8xbf16>
    %cst_71 = arith.constant dense<0.000000e+00> : vector<8x8xf32>
    %114 = tpu.matmul %113, %101, %cst_71 {dimension_numbers = #tpu.dot_dimension_numbers<[1], [0], [0], [1], [0, 0, 1, 1], [], []>} : vector<8x8xbf16>, vector<8x8xbf16>, vector<8x8xf32> -> vector<8x8xf32>
    %115 = vector.extract_strided_slice %114 {offsets = [0, 0], sizes = [4, 8], strides = [1, 1]} : vector<8x8xf32> to vector<4x8xf32>
    %c4_72 = arith.constant 4 : index
    %c0_73 = arith.constant 0 : index
    %116 = vector.load %arg7[%c4_72, %c0_73] : memref<16x16xf32, #tpu.memory_space<vmem>>, vector<4x8xf32>
    tpu.vector_store %arg7[%c4_72, %c0_73], %115 {strides = array<i32>} : memref<16x16xf32, #tpu.memory_space<vmem>>, vector<4x8xf32>,
    %117 = vector.extract_strided_slice %114 {offsets = [4, 0], sizes = [4, 8], strides = [1, 1]} : vector<8x8xf32> to vector<4x8xf32>
    %c4_74 = arith.constant 4 : index
    %c8_75 = arith.constant 8 : index
    %118 = vector.load %arg7[%c4_74, %c8_75] : memref<16x16xf32, #tpu.memory_space<vmem>>, vector<4x8xf32>
    tpu.vector_store %arg7[%c4_74, %c8_75], %117 {strides = array<i32>} : memref<16x16xf32, #tpu.memory_space<vmem>>, vector<4x8xf32>,
    %119 = vector.extract_strided_slice %7 {offsets = [8, 0], sizes = [4, 8], strides = [1, 1]} : vector<16x16xf32> to vector<4x8xf32>
    %c2_76 = arith.constant 2 : index
    %c0_77 = arith.constant 0 : index
    %c0_78 = arith.constant 0 : index
    %120 = vector.load %arg6[%c2_76, %c0_77, %c0_78] : memref<4x24x8xf32, #tpu.memory_space<vmem>>, vector<1x4x8xf32>
    %121 = vector.shape_cast %120 : vector<1x4x8xf32> to vector<4x8xf32>
    %122 = vector.shape_cast %119 : vector<4x8xf32> to vector<1x4x8xf32>
    tpu.vector_store %arg6[%c2_76, %c0_77, %c0_78], %122 {strides = array<i32>} : memref<4x24x8xf32, #tpu.memory_space<vmem>>, vector<1x4x8xf32>,
    %123 = vector.extract_strided_slice %14 {offsets = [8, 0], sizes = [4, 8], strides = [1, 1]} : vector<16x16xf32> to vector<4x8xf32>
    %c2_79 = arith.constant 2 : index
    %c8_80 = arith.constant 8 : index
    %c0_81 = arith.constant 0 : index
    %124 = vector.load %arg6[%c2_79, %c8_80, %c0_81] : memref<4x24x8xf32, #tpu.memory_space<vmem>>, vector<1x4x8xf32>
    %125 = vector.shape_cast %124 : vector<1x4x8xf32> to vector<4x8xf32>
    %126 = vector.shape_cast %123 : vector<4x8xf32> to vector<1x4x8xf32>
    tpu.vector_store %arg6[%c2_79, %c8_80, %c0_81], %126 {strides = array<i32>} : memref<4x24x8xf32, #tpu.memory_space<vmem>>, vector<1x4x8xf32>,
    %127 = vector.extract_strided_slice %18 {offsets = [8, 0], sizes = [4, 8], strides = [1, 1]} : vector<16x16xf32> to vector<4x8xf32>
    %c2_82 = arith.constant 2 : index
    %c16_83 = arith.constant 16 : index
    %c0_84 = arith.constant 0 : index
    %128 = vector.load %arg6[%c2_82, %c16_83, %c0_84] : memref<4x24x8xf32, #tpu.memory_space<vmem>>, vector<1x4x8xf32>
    %129 = vector.shape_cast %128 : vector<1x4x8xf32> to vector<4x8xf32>
    %130 = vector.shape_cast %127 : vector<4x8xf32> to vector<1x4x8xf32>
    tpu.vector_store %arg6[%c2_82, %c16_83, %c0_84], %130 {strides = array<i32>} : memref<4x24x8xf32, #tpu.memory_space<vmem>>, vector<1x4x8xf32>,
    %131 = vector.extract_strided_slice %7 {offsets = [8, 8], sizes = [4, 8], strides = [1, 1]} : vector<16x16xf32> to vector<4x8xf32>
    %c2_85 = arith.constant 2 : index
    %c4_86 = arith.constant 4 : index
    %c0_87 = arith.constant 0 : index
    %132 = vector.load %arg6[%c2_85, %c4_86, %c0_87] : memref<4x24x8xf32, #tpu.memory_space<vmem>>, vector<1x4x8xf32>
    %133 = vector.shape_cast %132 : vector<1x4x8xf32> to vector<4x8xf32>
    %134 = vector.shape_cast %131 : vector<4x8xf32> to vector<1x4x8xf32>
    tpu.vector_store %arg6[%c2_85, %c4_86, %c0_87], %134 {strides = array<i32>} : memref<4x24x8xf32, #tpu.memory_space<vmem>>, vector<1x4x8xf32>,
    %135 = vector.extract_strided_slice %14 {offsets = [8, 8], sizes = [4, 8], strides = [1, 1]} : vector<16x16xf32> to vector<4x8xf32>
    %c2_88 = arith.constant 2 : index
    %c12_89 = arith.constant 12 : index
    %c0_90 = arith.constant 0 : index
    %136 = vector.load %arg6[%c2_88, %c12_89, %c0_90] : memref<4x24x8xf32, #tpu.memory_space<vmem>>, vector<1x4x8xf32>
    %137 = vector.shape_cast %136 : vector<1x4x8xf32> to vector<4x8xf32>
    %138 = vector.shape_cast %135 : vector<4x8xf32> to vector<1x4x8xf32>
    tpu.vector_store %arg6[%c2_88, %c12_89, %c0_90], %138 {strides = array<i32>} : memref<4x24x8xf32, #tpu.memory_space<vmem>>, vector<1x4x8xf32>,
    %139 = vector.extract_strided_slice %18 {offsets = [8, 8], sizes = [4, 8], strides = [1, 1]} : vector<16x16xf32> to vector<4x8xf32>
    %c2_91 = arith.constant 2 : index
    %c20_92 = arith.constant 20 : index
    %c0_93 = arith.constant 0 : index
    %140 = vector.load %arg6[%c2_91, %c20_92, %c0_93] : memref<4x24x8xf32, #tpu.memory_space<vmem>>, vector<1x4x8xf32>
    %141 = vector.shape_cast %140 : vector<1x4x8xf32> to vector<4x8xf32>
    %142 = vector.shape_cast %139 : vector<4x8xf32> to vector<1x4x8xf32>
    tpu.vector_store %arg6[%c2_91, %c20_92, %c0_93], %142 {strides = array<i32>} : memref<4x24x8xf32, #tpu.memory_space<vmem>>, vector<1x4x8xf32>,
    %c2_94 = arith.constant 2 : index
    %c0_95 = arith.constant 0 : index
    %c0_96 = arith.constant 0 : index
    %143 = vector.load %arg6[%c2_94, %c0_95, %c0_96] : memref<4x24x8xf32, #tpu.memory_space<vmem>>, vector<1x8x8xf32>
    %144 = vector.shape_cast %143 : vector<1x8x8xf32> to vector<8x8xf32>
    %145 = arith.truncf %144 : vector<8x8xf32> to vector<8x8xbf16>
    %c2_97 = arith.constant 2 : index
    %c8_98 = arith.constant 8 : index
    %c0_99 = arith.constant 0 : index
    %146 = vector.load %arg6[%c2_97, %c8_98, %c0_99] : memref<4x24x8xf32, #tpu.memory_space<vmem>>, vector<1x8x8xf32>
    %147 = vector.shape_cast %146 : vector<1x8x8xf32> to vector<8x8xf32>
    %148 = arith.truncf %147 : vector<8x8xf32> to vector<8x8xbf16>
    %c2_100 = arith.constant 2 : index
    %c16_101 = arith.constant 16 : index
    %c0_102 = arith.constant 0 : index
    %149 = vector.load %arg6[%c2_100, %c16_101, %c0_102] : memref<4x24x8xf32, #tpu.memory_space<vmem>>, vector<1x8x8xf32>
    %150 = vector.shape_cast %149 : vector<1x8x8xf32> to vector<8x8xf32>
    %151 = arith.truncf %150 : vector<8x8xf32> to vector<8x8xbf16>
    %cst_103 = arith.constant dense<0.000000e+00> : vector<8x8xf32>
    %152 = tpu.matmul %145, %148, %cst_103 {dimension_numbers = #tpu.dot_dimension_numbers<[1], [1], [0], [0], [0, 0, 1, 0], [], []>} : vector<8x8xbf16>, vector<8x8xbf16>, vector<8x8xf32> -> vector<8x8xf32>
    %cst_104 = arith.constant dense<0xFF800000> : vector<8xf32>
    %153 = vector.multi_reduction <maximumf>, %152, %cst_104 [1] : vector<8x8xf32> to vector<8xf32>
    %154 = vector.shape_cast %153 : vector<8xf32> to vector<8x1xf32>
    %155 = vector.broadcast %154 : vector<8x1xf32> to vector<8x8xf32>
    %156 = arith.subf %152, %155 : vector<8x8xf32>
    %157 = math.exp %156 : vector<8x8xf32>
    %cst_105 = arith.constant dense<0.000000e+00> : vector<8xf32>
    %158 = vector.multi_reduction <add>, %157, %cst_105 [1] : vector<8x8xf32> to vector<8xf32>
    %159 = vector.shape_cast %158 : vector<8xf32> to vector<8x1xf32>
    %160 = tpu.reciprocal %159 {approx = true} : vector<8x1xf32> -> vector<8x1xf32>
    %161 = vector.broadcast %160 : vector<8x1xf32> to vector<8x8xf32>
    %162 = arith.mulf %157, %161 : vector<8x8xf32>
    %163 = arith.truncf %162 : vector<8x8xf32> to vector<8x8xbf16>
    %cst_106 = arith.constant dense<0.000000e+00> : vector<8x8xf32>
    %164 = tpu.matmul %163, %151, %cst_106 {dimension_numbers = #tpu.dot_dimension_numbers<[1], [0], [0], [1], [0, 0, 1, 1], [], []>} : vector<8x8xbf16>, vector<8x8xbf16>, vector<8x8xf32> -> vector<8x8xf32>
    %165 = vector.extract_strided_slice %164 {offsets = [0, 0], sizes = [4, 8], strides = [1, 1]} : vector<8x8xf32> to vector<4x8xf32>
    %c8_107 = arith.constant 8 : index
    %c0_108 = arith.constant 0 : index
    %166 = vector.load %arg7[%c8_107, %c0_108] : memref<16x16xf32, #tpu.memory_space<vmem>>, vector<4x8xf32>
    tpu.vector_store %arg7[%c8_107, %c0_108], %165 {strides = array<i32>} : memref<16x16xf32, #tpu.memory_space<vmem>>, vector<4x8xf32>,
    %167 = vector.extract_strided_slice %164 {offsets = [4, 0], sizes = [4, 8], strides = [1, 1]} : vector<8x8xf32> to vector<4x8xf32>
    %c8_109 = arith.constant 8 : index
    %c8_110 = arith.constant 8 : index
    %168 = vector.load %arg7[%c8_109, %c8_110] : memref<16x16xf32, #tpu.memory_space<vmem>>, vector<4x8xf32>
    tpu.vector_store %arg7[%c8_109, %c8_110], %167 {strides = array<i32>} : memref<16x16xf32, #tpu.memory_space<vmem>>, vector<4x8xf32>,
    %169 = vector.extract_strided_slice %7 {offsets = [12, 0], sizes = [4, 8], strides = [1, 1]} : vector<16x16xf32> to vector<4x8xf32>
    %c3 = arith.constant 3 : index
    %c0_111 = arith.constant 0 : index
    %c0_112 = arith.constant 0 : index
    %170 = vector.load %arg6[%c3, %c0_111, %c0_112] : memref<4x24x8xf32, #tpu.memory_space<vmem>>, vector<1x4x8xf32>
    %171 = vector.shape_cast %170 : vector<1x4x8xf32> to vector<4x8xf32>
    %172 = vector.shape_cast %169 : vector<4x8xf32> to vector<1x4x8xf32>
    tpu.vector_store %arg6[%c3, %c0_111, %c0_112], %172 {strides = array<i32>} : memref<4x24x8xf32, #tpu.memory_space<vmem>>, vector<1x4x8xf32>,
    %173 = vector.extract_strided_slice %14 {offsets = [12, 0], sizes = [4, 8], strides = [1, 1]} : vector<16x16xf32> to vector<4x8xf32>
    %c3_113 = arith.constant 3 : index
    %c8_114 = arith.constant 8 : index
    %c0_115 = arith.constant 0 : index
    %174 = vector.load %arg6[%c3_113, %c8_114, %c0_115] : memref<4x24x8xf32, #tpu.memory_space<vmem>>, vector<1x4x8xf32>
    %175 = vector.shape_cast %174 : vector<1x4x8xf32> to vector<4x8xf32>
    %176 = vector.shape_cast %173 : vector<4x8xf32> to vector<1x4x8xf32>
    tpu.vector_store %arg6[%c3_113, %c8_114, %c0_115], %176 {strides = array<i32>} : memref<4x24x8xf32, #tpu.memory_space<vmem>>, vector<1x4x8xf32>,
    %177 = vector.extract_strided_slice %18 {offsets = [12, 0], sizes = [4, 8], strides = [1, 1]} : vector<16x16xf32> to vector<4x8xf32>
    %c3_116 = arith.constant 3 : index
    %c16_117 = arith.constant 16 : index
    %c0_118 = arith.constant 0 : index
    %178 = vector.load %arg6[%c3_116, %c16_117, %c0_118] : memref<4x24x8xf32, #tpu.memory_space<vmem>>, vector<1x4x8xf32>
    %179 = vector.shape_cast %178 : vector<1x4x8xf32> to vector<4x8xf32>
    %180 = vector.shape_cast %177 : vector<4x8xf32> to vector<1x4x8xf32>
    tpu.vector_store %arg6[%c3_116, %c16_117, %c0_118], %180 {strides = array<i32>} : memref<4x24x8xf32, #tpu.memory_space<vmem>>, vector<1x4x8xf32>,
    %181 = vector.extract_strided_slice %7 {offsets = [12, 8], sizes = [4, 8], strides = [1, 1]} : vector<16x16xf32> to vector<4x8xf32>
    %c3_119 = arith.constant 3 : index
    %c4_120 = arith.constant 4 : index
    %c0_121 = arith.constant 0 : index
    %182 = vector.load %arg6[%c3_119, %c4_120, %c0_121] : memref<4x24x8xf32, #tpu.memory_space<vmem>>, vector<1x4x8xf32>
    %183 = vector.shape_cast %182 : vector<1x4x8xf32> to vector<4x8xf32>
    %184 = vector.shape_cast %181 : vector<4x8xf32> to vector<1x4x8xf32>
    tpu.vector_store %arg6[%c3_119, %c4_120, %c0_121], %184 {strides = array<i32>} : memref<4x24x8xf32, #tpu.memory_space<vmem>>, vector<1x4x8xf32>,
    %185 = vector.extract_strided_slice %14 {offsets = [12, 8], sizes = [4, 8], strides = [1, 1]} : vector<16x16xf32> to vector<4x8xf32>
    %c3_122 = arith.constant 3 : index
    %c12_123 = arith.constant 12 : index
    %c0_124 = arith.constant 0 : index
    %186 = vector.load %arg6[%c3_122, %c12_123, %c0_124] : memref<4x24x8xf32, #tpu.memory_space<vmem>>, vector<1x4x8xf32>
    %187 = vector.shape_cast %186 : vector<1x4x8xf32> to vector<4x8xf32>
    %188 = vector.shape_cast %185 : vector<4x8xf32> to vector<1x4x8xf32>
    tpu.vector_store %arg6[%c3_122, %c12_123, %c0_124], %188 {strides = array<i32>} : memref<4x24x8xf32, #tpu.memory_space<vmem>>, vector<1x4x8xf32>,
    %189 = vector.extract_strided_slice %18 {offsets = [12, 8], sizes = [4, 8], strides = [1, 1]} : vector<16x16xf32> to vector<4x8xf32>
    %c3_125 = arith.constant 3 : index
    %c20_126 = arith.constant 20 : index
    %c0_127 = arith.constant 0 : index
    %190 = vector.load %arg6[%c3_125, %c20_126, %c0_127] : memref<4x24x8xf32, #tpu.memory_space<vmem>>, vector<1x4x8xf32>
    %191 = vector.shape_cast %190 : vector<1x4x8xf32> to vector<4x8xf32>
    %192 = vector.shape_cast %189 : vector<4x8xf32> to vector<1x4x8xf32>
    tpu.vector_store %arg6[%c3_125, %c20_126, %c0_127], %192 {strides = array<i32>} : memref<4x24x8xf32, #tpu.memory_space<vmem>>, vector<1x4x8xf32>,
    %c3_128 = arith.constant 3 : index
    %c0_129 = arith.constant 0 : index
    %c0_130 = arith.constant 0 : index
    %193 = vector.load %arg6[%c3_128, %c0_129, %c0_130] : memref<4x24x8xf32, #tpu.memory_space<vmem>>, vector<1x8x8xf32>
    %194 = vector.shape_cast %193 : vector<1x8x8xf32> to vector<8x8xf32>
    %195 = arith.truncf %194 : vector<8x8xf32> to vector<8x8xbf16>
    %c3_131 = arith.constant 3 : index
    %c8_132 = arith.constant 8 : index
    %c0_133 = arith.constant 0 : index
    %196 = vector.load %arg6[%c3_131, %c8_132, %c0_133] : memref<4x24x8xf32, #tpu.memory_space<vmem>>, vector<1x8x8xf32>
    %197 = vector.shape_cast %196 : vector<1x8x8xf32> to vector<8x8xf32>
    %198 = arith.truncf %197 : vector<8x8xf32> to vector<8x8xbf16>
    %c3_134 = arith.constant 3 : index
    %c16_135 = arith.constant 16 : index
    %c0_136 = arith.constant 0 : index
    %199 = vector.load %arg6[%c3_134, %c16_135, %c0_136] : memref<4x24x8xf32, #tpu.memory_space<vmem>>, vector<1x8x8xf32>
    %200 = vector.shape_cast %199 : vector<1x8x8xf32> to vector<8x8xf32>
    %201 = arith.truncf %200 : vector<8x8xf32> to vector<8x8xbf16>
    %cst_137 = arith.constant dense<0.000000e+00> : vector<8x8xf32>
    %202 = tpu.matmul %195, %198, %cst_137 {dimension_numbers = #tpu.dot_dimension_numbers<[1], [1], [0], [0], [0, 0, 1, 0], [], []>} : vector<8x8xbf16>, vector<8x8xbf16>, vector<8x8xf32> -> vector<8x8xf32>
    %cst_138 = arith.constant dense<0xFF800000> : vector<8xf32>
    %203 = vector.multi_reduction <maximumf>, %202, %cst_138 [1] : vector<8x8xf32> to vector<8xf32>
    %204 = vector.shape_cast %203 : vector<8xf32> to vector<8x1xf32>
    %205 = vector.broadcast %204 : vector<8x1xf32> to vector<8x8xf32>
    %206 = arith.subf %202, %205 : vector<8x8xf32>
    %207 = math.exp %206 : vector<8x8xf32>
    %cst_139 = arith.constant dense<0.000000e+00> : vector<8xf32>
    %208 = vector.multi_reduction <add>, %207, %cst_139 [1] : vector<8x8xf32> to vector<8xf32>
    %209 = vector.shape_cast %208 : vector<8xf32> to vector<8x1xf32>
    %210 = tpu.reciprocal %209 {approx = true} : vector<8x1xf32> -> vector<8x1xf32>
    %211 = vector.broadcast %210 : vector<8x1xf32> to vector<8x8xf32>
    %212 = arith.mulf %207, %211 : vector<8x8xf32>
    %213 = arith.truncf %212 : vector<8x8xf32> to vector<8x8xbf16>
    %cst_140 = arith.constant dense<0.000000e+00> : vector<8x8xf32>
    %214 = tpu.matmul %213, %201, %cst_140 {dimension_numbers = #tpu.dot_dimension_numbers<[1], [0], [0], [1], [0, 0, 1, 1], [], []>} : vector<8x8xbf16>, vector<8x8xbf16>, vector<8x8xf32> -> vector<8x8xf32>
    %215 = vector.extract_strided_slice %214 {offsets = [0, 0], sizes = [4, 8], strides = [1, 1]} : vector<8x8xf32> to vector<4x8xf32>
    %c12_141 = arith.constant 12 : index
    %c0_142 = arith.constant 0 : index
    %216 = vector.load %arg7[%c12_141, %c0_142] : memref<16x16xf32, #tpu.memory_space<vmem>>, vector<4x8xf32>
    tpu.vector_store %arg7[%c12_141, %c0_142], %215 {strides = array<i32>} : memref<16x16xf32, #tpu.memory_space<vmem>>, vector<4x8xf32>,
    %217 = vector.extract_strided_slice %214 {offsets = [4, 0], sizes = [4, 8], strides = [1, 1]} : vector<8x8xf32> to vector<4x8xf32>
    %c12_143 = arith.constant 12 : index
    %c8_144 = arith.constant 8 : index
    %218 = vector.load %arg7[%c12_143, %c8_144] : memref<16x16xf32, #tpu.memory_space<vmem>>, vector<4x8xf32>
    tpu.vector_store %arg7[%c12_143, %c8_144], %217 {strides = array<i32>} : memref<16x16xf32, #tpu.memory_space<vmem>>, vector<4x8xf32>,
    %c0_145 = arith.constant 0 : index
    %c0_146 = arith.constant 0 : index
    %219 = vector.load %arg7[%c0_145, %c0_146] : memref<16x16xf32, #tpu.memory_space<vmem>>, vector<16x16xf32>
    %220 = arith.truncf %219 : vector<16x16xf32> to vector<16x16xbf16>
    %c64 = arith.constant 64 : index
    %c0_147 = arith.constant 0 : index
    %221 = vector.load %arg3[%c64, %c0_147] : memref<144x32xbf16, #tpu.memory_space<vmem>>, vector<16x32xbf16>
    %cst_148 = arith.constant dense<0.000000e+00> : vector<16x32xf32>
    %222 = tpu.matmul %220, %221, %cst_148 {dimension_numbers = #tpu.dot_dimension_numbers<[1], [0], [0], [1], [0, 0, 1, 1], [], []>} : vector<16x16xbf16>, vector<16x32xbf16>, vector<16x32xf32> -> vector<16x32xf32>
    %c3_149 = arith.constant 3 : index
    %c0_150 = arith.constant 0 : index
    %223 = vector.load %arg4[%c3_149, %c0_150] : memref<8x32xf32, #tpu.memory_space<vmem>>, vector<1x32xf32>
    %224 = vector.broadcast %223 : vector<1x32xf32> to vector<16x32xf32>
    %225 = arith.addf %222, %224 : vector<16x32xf32>
    %226 = arith.addf %1, %225 : vector<16x32xf32>
    %227 = vector.extract_strided_slice %226 {offsets = [0, 0], sizes = [8, 32], strides = [1, 1]} : vector<16x32xf32> to vector<8x32xf32>
    %228 = vector.shape_cast %227 : vector<8x32xf32> to vector<1x8x32xf32>
    %cst_151 = arith.constant dense<0.000000e+00> : vector<1xf32>
    %229 = vector.multi_reduction <add>, %228, %cst_151 [1, 2] : vector<1x8x32xf32> to vector<1xf32>
    %230 = vector.shape_cast %229 : vector<1xf32> to vector<1x1x1xf32>
    %231 = vector.extract %230[0, 0, 0] : f32 from vector<1x1x1xf32>
    %cst_152 = arith.constant 3.906250e-03 : f32
    %232 = arith.mulf %231, %cst_152 : f32
    %233 = vector.broadcast %232 : f32 to vector<8x32xf32>
    %234 = arith.subf %227, %233 : vector<8x32xf32>
    %235 = arith.mulf %234, %234 : vector<8x32xf32>
    %236 = vector.shape_cast %235 : vector<8x32xf32> to vector<1x8x32xf32>
    %cst_153 = arith.constant dense<0.000000e+00> : vector<1xf32>
    %237 = vector.multi_reduction <add>, %236, %cst_153 [1, 2] : vector<1x8x32xf32> to vector<1xf32>
    %238 = vector.shape_cast %237 : vector<1xf32> to vector<1x1x1xf32>
    %239 = vector.extract %238[0, 0, 0] : f32 from vector<1x1x1xf32>
    %cst_154 = arith.constant 3.906250e-03 : f32
    %240 = arith.mulf %239, %cst_154 : f32
    %cst_155 = arith.constant 9.99999974E-6 : f32
    %241 = arith.addf %240, %cst_155 : f32
    %242 = math.rsqrt %241 : f32
    %243 = vector.broadcast %242 : f32 to vector<8x32xf32>
    %244 = arith.mulf %234, %243 : vector<8x32xf32>
    %245 = vector.extract_strided_slice %226 {offsets = [8, 0], sizes = [8, 32], strides = [1, 1]} : vector<16x32xf32> to vector<8x32xf32>
    %246 = vector.shape_cast %245 : vector<8x32xf32> to vector<1x8x32xf32>
    %cst_156 = arith.constant dense<0.000000e+00> : vector<1xf32>
    %247 = vector.multi_reduction <add>, %246, %cst_156 [1, 2] : vector<1x8x32xf32> to vector<1xf32>
    %248 = vector.shape_cast %247 : vector<1xf32> to vector<1x1x1xf32>
    %249 = vector.extract %248[0, 0, 0] : f32 from vector<1x1x1xf32>
    %cst_157 = arith.constant 3.906250e-03 : f32
    %250 = arith.mulf %249, %cst_157 : f32
    %251 = vector.broadcast %250 : f32 to vector<8x32xf32>
    %252 = arith.subf %245, %251 : vector<8x32xf32>
    %253 = arith.mulf %252, %252 : vector<8x32xf32>
    %254 = vector.shape_cast %253 : vector<8x32xf32> to vector<1x8x32xf32>
    %cst_158 = arith.constant dense<0.000000e+00> : vector<1xf32>
    %255 = vector.multi_reduction <add>, %254, %cst_158 [1, 2] : vector<1x8x32xf32> to vector<1xf32>
    %256 = vector.shape_cast %255 : vector<1xf32> to vector<1x1x1xf32>
    %257 = vector.extract %256[0, 0, 0] : f32 from vector<1x1x1xf32>
    %cst_159 = arith.constant 3.906250e-03 : f32
    %258 = arith.mulf %257, %cst_159 : f32
    %cst_160 = arith.constant 9.99999974E-6 : f32
    %259 = arith.addf %258, %cst_160 : f32
    %260 = math.rsqrt %259 : f32
    %261 = vector.broadcast %260 : f32 to vector<8x32xf32>
    %262 = arith.mulf %252, %261 : vector<8x32xf32>
    %263 = tpu.concatenate %244, %262 in 0 : vector<8x32xf32>, vector<8x32xf32> -> vector<16x32xf32>
    %264 = arith.truncf %263 : vector<16x32xf32> to vector<16x32xbf16>
    %c80 = arith.constant 80 : index
    %c0_161 = arith.constant 0 : index
    %265 = vector.load %arg3[%c80, %c0_161] : memref<144x32xbf16, #tpu.memory_space<vmem>>, vector<32x32xbf16>
    %cst_162 = arith.constant dense<0.000000e+00> : vector<16x32xf32>
    %266 = tpu.matmul %264, %265, %cst_162 {dimension_numbers = #tpu.dot_dimension_numbers<[1], [0], [0], [1], [0, 0, 1, 1], [], []>} : vector<16x32xbf16>, vector<32x32xbf16>, vector<16x32xf32> -> vector<16x32xf32>
    %c4_163 = arith.constant 4 : index
    %c0_164 = arith.constant 0 : index
    %267 = vector.load %arg4[%c4_163, %c0_164] : memref<8x32xf32, #tpu.memory_space<vmem>>, vector<1x32xf32>
    %268 = vector.broadcast %267 : vector<1x32xf32> to vector<16x32xf32>
    %269 = arith.addf %266, %268 : vector<16x32xf32>
    %cst_165 = arith.constant 5.000000e-01 : f32
    %270 = vector.broadcast %cst_165 : f32 to vector<16x32xf32>
    %271 = arith.mulf %270, %269 : vector<16x32xf32>
    %cst_166 = arith.constant 4.471500e-02 : f32
    %272 = vector.broadcast %cst_166 : f32 to vector<16x32xf32>
    %273 = arith.mulf %272, %269 : vector<16x32xf32>
    %274 = arith.mulf %273, %269 : vector<16x32xf32>
    %275 = arith.mulf %274, %269 : vector<16x32xf32>
    %276 = arith.addf %269, %275 : vector<16x32xf32>
    %cst_167 = arith.constant 0.797884583 : f32
    %277 = vector.broadcast %cst_167 : f32 to vector<16x32xf32>
    %278 = arith.mulf %277, %276 : vector<16x32xf32>
    %279 = math.tanh %278 : vector<16x32xf32>
    %cst_168 = arith.constant 1.000000e+00 : f32
    %280 = vector.broadcast %cst_168 : f32 to vector<16x32xf32>
    %281 = arith.addf %280, %279 : vector<16x32xf32>
    %282 = arith.mulf %271, %281 : vector<16x32xf32>
    %283 = arith.truncf %282 : vector<16x32xf32> to vector<16x32xbf16>
    %c112 = arith.constant 112 : index
    %c0_169 = arith.constant 0 : index
    %284 = vector.load %arg3[%c112, %c0_169] : memref<144x32xbf16, #tpu.memory_space<vmem>>, vector<32x32xbf16>
    %cst_170 = arith.constant dense<0.000000e+00> : vector<16x32xf32>
    %285 = tpu.matmul %283, %284, %cst_170 {dimension_numbers = #tpu.dot_dimension_numbers<[1], [0], [0], [1], [0, 0, 1, 1], [], []>} : vector<16x32xbf16>, vector<32x32xbf16>, vector<16x32xf32> -> vector<16x32xf32>
    %c5 = arith.constant 5 : index
    %c0_171 = arith.constant 0 : index
    %286 = vector.load %arg4[%c5, %c0_171] : memref<8x32xf32, #tpu.memory_space<vmem>>, vector<1x32xf32>
    %287 = vector.broadcast %286 : vector<1x32xf32> to vector<16x32xf32>
    %288 = arith.addf %285, %287 : vector<16x32xf32>
    %289 = arith.addf %263, %288 : vector<16x32xf32>
    %290 = vector.extract_strided_slice %289 {offsets = [0, 0], sizes = [8, 32], strides = [1, 1]} : vector<16x32xf32> to vector<8x32xf32>
    %291 = vector.shape_cast %290 : vector<8x32xf32> to vector<1x8x32xf32>
    %cst_172 = arith.constant dense<0.000000e+00> : vector<1xf32>
    %292 = vector.multi_reduction <add>, %291, %cst_172 [1, 2] : vector<1x8x32xf32> to vector<1xf32>
    %293 = vector.shape_cast %292 : vector<1xf32> to vector<1x1x1xf32>
    %294 = vector.extract %293[0, 0, 0] : f32 from vector<1x1x1xf32>
    %cst_173 = arith.constant 3.906250e-03 : f32
    %295 = arith.mulf %294, %cst_173 : f32
    %296 = vector.broadcast %295 : f32 to vector<8x32xf32>
    %297 = arith.subf %290, %296 : vector<8x32xf32>
    %298 = arith.mulf %297, %297 : vector<8x32xf32>
    %299 = vector.shape_cast %298 : vector<8x32xf32> to vector<1x8x32xf32>
    %cst_174 = arith.constant dense<0.000000e+00> : vector<1xf32>
    %300 = vector.multi_reduction <add>, %299, %cst_174 [1, 2] : vector<1x8x32xf32> to vector<1xf32>
    %301 = vector.shape_cast %300 : vector<1xf32> to vector<1x1x1xf32>
    %302 = vector.extract %301[0, 0, 0] : f32 from vector<1x1x1xf32>
    %cst_175 = arith.constant 3.906250e-03 : f32
    %303 = arith.mulf %302, %cst_175 : f32
    %cst_176 = arith.constant 9.99999974E-6 : f32
    %304 = arith.addf %303, %cst_176 : f32
    %305 = math.rsqrt %304 : f32
    %306 = vector.broadcast %305 : f32 to vector<8x32xf32>
    %307 = arith.mulf %297, %306 : vector<8x32xf32>
    %308 = vector.extract_strided_slice %289 {offsets = [8, 0], sizes = [8, 32], strides = [1, 1]} : vector<16x32xf32> to vector<8x32xf32>
    %309 = vector.shape_cast %308 : vector<8x32xf32> to vector<1x8x32xf32>
    %cst_177 = arith.constant dense<0.000000e+00> : vector<1xf32>
    %310 = vector.multi_reduction <add>, %309, %cst_177 [1, 2] : vector<1x8x32xf32> to vector<1xf32>
    %311 = vector.shape_cast %310 : vector<1xf32> to vector<1x1x1xf32>
    %312 = vector.extract %311[0, 0, 0] : f32 from vector<1x1x1xf32>
    %cst_178 = arith.constant 3.906250e-03 : f32
    %313 = arith.mulf %312, %cst_178 : f32
    %314 = vector.broadcast %313 : f32 to vector<8x32xf32>
    %315 = arith.subf %308, %314 : vector<8x32xf32>
    %316 = arith.mulf %315, %315 : vector<8x32xf32>
    %317 = vector.shape_cast %316 : vector<8x32xf32> to vector<1x8x32xf32>
    %cst_179 = arith.constant dense<0.000000e+00> : vector<1xf32>
    %318 = vector.multi_reduction <add>, %317, %cst_179 [1, 2] : vector<1x8x32xf32> to vector<1xf32>
    %319 = vector.shape_cast %318 : vector<1xf32> to vector<1x1x1xf32>
    %320 = vector.extract %319[0, 0, 0] : f32 from vector<1x1x1xf32>
    %cst_180 = arith.constant 3.906250e-03 : f32
    %321 = arith.mulf %320, %cst_180 : f32
    %cst_181 = arith.constant 9.99999974E-6 : f32
    %322 = arith.addf %321, %cst_181 : f32
    %323 = math.rsqrt %322 : f32
    %324 = vector.broadcast %323 : f32 to vector<8x32xf32>
    %325 = arith.mulf %315, %324 : vector<8x32xf32>
    %326 = tpu.concatenate %307, %325 in 0 : vector<8x32xf32>, vector<8x32xf32> -> vector<16x32xf32>
    %327 = arith.addf %326, %1 : vector<16x32xf32>
    %c0_182 = arith.constant 0 : index
    %c0_183 = arith.constant 0 : index
    %328 = vector.load %arg5[%c0_182, %c0_183] : memref<16x32xf32, #tpu.memory_space<vmem>>, vector<16x32xf32>
    tpu.vector_store %arg5[%c0_182, %c0_183], %327 {strides = array<i32>} : memref<16x32xf32, #tpu.memory_space<vmem>>, vector<16x32xf32>,
    return
  }
  func.func @transform_0(%arg0: i32) -> (i32, i32) {
    %c0_i32 = arith.constant 0 : i32
    %c0_i32_0 = arith.constant 0 : i32
    %c0_i32_1 = arith.constant 0 : i32
    return %c0_i32, %c0_i32_0 : i32, i32
  }
  func.func @transform_1(%arg0: i32) -> (i32, i32) {
    %c0_i32 = arith.constant 0 : i32
    %c0_i32_0 = arith.constant 0 : i32
    %c0_i32_1 = arith.constant 0 : i32
    return %c0_i32, %c0_i32_0 : i32, i32
  }
  func.func @transform_2(%arg0: i32) -> (i32, i32) {
    %c0_i32 = arith.constant 0 : i32
    %c0_i32_0 = arith.constant 0 : i32
    %c0_i32_1 = arith.constant 0 : i32
    return %c0_i32, %c0_i32_0 : i32, i32
  }
  func.func @transform_3(%arg0: i32) -> (i32, i32) {
    %c0_i32 = arith.constant 0 : i32
    %c0_i32_0 = arith.constant 0 : i32
    %c0_i32_1 = arith.constant 0 : i32
    return %c0_i32, %c0_i32_0 : i32, i32
  }
  func.func @transform_4(%arg0: i32) -> (i32, i32) {
    %c0_i32 = arith.constant 0 : i32
    %c0_i32_0 = arith.constant 0 : i32
    %c0_i32_1 = arith.constant 0 : i32
    return %c0_i32, %c0_i32_0 : i32, i32
  }
}

</mosaic_0001>

<llo_original>
// kernel: decoder_forward.1
$region0: #{decoder_forward.1}
  #allocation0 [shape = 'u32[]', space=smem, size = 0x4, offset = 0x4, fixed_abs, tag = 'smem constant byte address 0x4 - core index']
  #allocation1 [shape = 'u32[72,128]{1,0:T(1,128)}', space=vmem, size = 0x9000, scoped, tag = 'internal scratch']
  #allocation2 [shape = 'f32[4,24,8]{2,1,0:T(8,128)}', space=vmem, size = 0xc000, scoped, tag = 'scratch operand']
  #allocation3 [shape = 'f32[16,16]{1,0:T(8,128)}', space=vmem, size = 0x2000, scoped, tag = 'scratch operand']
  %s0 = inlined_call_operand.vmem [shape: f32[16,32], index: 0, kind: input, shape index: {}]
  %s1 = inlined_call_operand.vmem [shape: f32[16,32], index: 1, kind: input, shape index: {}]
  %s2 = inlined_call_operand.vmem [shape: bf16[144,32], index: 2, kind: input, shape index: {}]
  %s3 = inlined_call_operand.vmem [shape: f32[8,32], index: 3, kind: input, shape index: {}]
  %s4 = inlined_call_operand.hbm [shape: f32[16,32], index: 4, kind: output, shape index: {}]
  %s5 = sld [smem:[#allocation0]]
  $region26: #{decoder_forward.1} parent=0
    _
  %s7 = ssub.s32 1, %s5
  %s8 = scalar_select 0, %s7, %s5
  $region1: #{decoder_forward.1} parent=0
    #allocation4 [shape = 'u8[8192]{0}', space=vmem, size = 0x2000, scoped, tag = 'output window, operand 0, single buffered']
    #allocation5 [shape = 's32[1]{0}', space=sflag, size = 0x4, scoped, tag = 'scoped memory for decoder_forward.1']
    %9 = vsyncpa [#allocation5], 0
    // Predicated region
    $region2: #{decoder_forward.1} parent=1 // pred_check
      _
    $region3: #{decoder_forward.1} parent=1 // pred_check_branch
      %11 = sbr.rel (0) target = $region5
    $region4: #{decoder_forward.1} parent=1 // pred_region
      _
    $region5: #{decoder_forward.1} parent=1 // pred_fallthru
      _
    // Predicated region
    $region6: #{decoder_forward.1} parent=1 // pred_check
      _
    $region7: #{decoder_forward.1} parent=1 // pred_check_branch
      %13 = sbr.rel (0) target = $region9
    $region8: #{decoder_forward.1} parent=1 // pred_region
      _
    $region9: #{decoder_forward.1} parent=1 // pred_fallthru
      _
    // Predicated region
    $region10: #{decoder_forward.1} parent=1 // pred_check
      _
    $region11: #{decoder_forward.1} parent=1 // pred_check_branch
      %15 = sbr.rel (0) target = $region13
    $region12: #{decoder_forward.1} parent=1 // pred_region
      _
    $region13: #{decoder_forward.1} parent=1 // pred_fallthru
      _
    // Predicated region
    $region14: #{decoder_forward.1} parent=1 // pred_check
      _
    $region15: #{decoder_forward.1} parent=1 // pred_check_branch
      %17 = sbr.rel (0) target = $region17
    $region16: #{decoder_forward.1} parent=1 // pred_region
      _
    $region17: #{decoder_forward.1} parent=1 // pred_fallthru
      _
    %v19 = vld [vmem:[%s0] sm:$0xff]
    %v20 = vld [vmem:[%s0 + $0x8] sm:$0xff]
    %v21 = vld [vmem:[%s1] sm:$0xff]
    %v22 = vld [vmem:[%s1 + $0x8] sm:$0xff]
    %v23 = vpack.c.bf16 %v22, %v21
    %v24 = vld [vmem:[%s2 + $0x10] sm:$0xf]
    %v25 = vld [vmem:[%s2 + $0x14] sm:$0xf]
    %v26 = vld [vmem:[%s2 + $0x18] sm:$0xf]
    %v27 = vld [vmem:[%s2 + $0x1c] sm:$0xf]
    %v28 = vld [vmem:[%s3] sm:$0x1]
    %v29 = vperm.slane %v28, 0
    %v34 = vunpack.c.l.b16 %v24
    %v35 = vunpack.c.l.b16 %v25
    %v36 = vunpack.c.l.b16 %v26
    %v37 = vunpack.c.l.b16 %v27
    %v38 = vpack.c.b16 %v35, %v34
    %v39 = vpack.c.b16 %v37, %v36
    %vm42 = vcmask 261120
    %v44 = vsel %vm42, %v23, 0
    %46 = vmatpush.bf16.msra.mxu0 0
    %47 = vmatpush.bf16.msra.mxu0 0
    %48 = vmatpush.bf16.msra.mxu0 0
    %49 = vmatpush.bf16.msra.mxu0 0
    %50 = vmatpush.bf16.msra.mxu0 0
    %51 = vmatpush.bf16.msra.mxu0 0
    %52 = vmatpush.bf16.msra.mxu0 %v39
    %53 = vmatpush.bf16.msra.mxu0 %v38
    %54 = vmatmul.bf16.gmra.mxu0 %v44
    %v55 = vpop.f32.mrf.mxu0
    %v56 = vadd.f32 %v29, %v55
    %v57 = vpop.f32.mrf.mxu0
    %v58 = vadd.f32 %v29, %v57
    %59 = vdwg.mxu0
    %v60 = vpack.c.bf16 %v20, %v19
    %v61 = vld [vmem:[%s2] sm:$0xf]
    %v62 = vld [vmem:[%s2 + $0x4] sm:$0xf]
    %v63 = vld [vmem:[%s2 + $0x8] sm:$0xf]
    %v64 = vld [vmem:[%s2 + $0xc] sm:$0xf]
    %v69 = vunpack.c.l.b16 %v61
    %v70 = vunpack.c.l.b16 %v62
    %v71 = vunpack.c.l.b16 %v63
    %v72 = vunpack.c.l.b16 %v64
    %v73 = vpack.c.b16 %v70, %v69
    %v74 = vpack.c.b16 %v72, %v71
    %v78 = vsel %vm42, %v60, 0
    %80 = vmatpush.bf16.msra.mxu0 0
    %81 = vmatpush.bf16.msra.mxu0 0
    %82 = vmatpush.bf16.msra.mxu0 0
    %83 = vmatpush.bf16.msra.mxu0 0
    %84 = vmatpush.bf16.msra.mxu0 0
    %85 = vmatpush.bf16.msra.mxu0 0
    %86 = vmatpush.bf16.msra.mxu0 %v74
    %87 = vmatpush.bf16.msra.mxu0 %v73
    %88 = vmatmul.bf16.gmra.mxu0 %v78
    %v89 = vpop.f32.mrf.mxu0
    %v90 = vadd.f32 0.0, %v89
    %v91 = vpop.f32.mrf.mxu0
    %v92 = vadd.f32 0.0, %v91
    %93 = vdwg.mxu0
    %v94 = vld [vmem:[%s3 + $0x1] sm:$0x1]
    %v95 = vperm.slane %v94, 0
    %v96 = vadd.f32 %v90, %v95
    %v97 = vadd.f32 %v92, %v95
    %v98 = vld [vmem:[%s3 + $0x2] sm:$0x1]
    %v99 = vperm.slane %v98, 0
    %101 = vrot.lane.b32.xlu0 %v99, 16
    %v102 = vpop.permute.xlu0 %101
    %v104 = vadd.f32 %v90, %v102
    %v105 = vadd.f32 %v92, %v102
    %vm106 = vcmask 60416
    %107 = vst.msk [vmem:[#allocation2] sm:$0xf] %vm106, %v56
    %108 = vst.msk [vmem:[#allocation2 + $0x8] sm:$0xf] %vm106, %v96
    %110 = vrot.lane.b32.xlu0 %v104, 112
    %v111 = vpop.permute.xlu0 %110
    %113 = vst.msk [vmem:[#allocation2 + $0x10] sm:$0xf] %vm106, %v111
    %115 = vrot.lane.b32.xlu0 %v56, 120
    %v116 = vpop.permute.xlu0 %115
    %118 = vst.msk [vmem:[#allocation2 + $0x4] sm:$0xf] %vm106, %v116
    %120 = vrot.lane.b32.xlu0 %v96, 120
    %v121 = vpop.permute.xlu0 %120
    %123 = vst.msk [vmem:[#allocation2 + $0xc] sm:$0xf] %vm106, %v121
    %124 = vrot.lane.b32.xlu0 %v104, 104
    %v125 = vpop.permute.xlu0 %124
    %127 = vst.msk [vmem:[#allocation2 + $0x14] sm:$0xf] %vm106, %v125
    %v128 = vld [vmem:[#allocation2] sm:$0xff]
    %v129 = vpack.c.bf16 %v128, %v128
    %v130 = vld [vmem:[#allocation2 + $0x8] sm:$0xff]
    %v131 = vpack.c.bf16 %v130, %v130
    %v132 = vld [vmem:[#allocation2 + $0x10] sm:$0xff]
    %v133 = vpack.c.bf16 %v132, %v132
    %vm134 = vcmask 64512
    %v136 = vsel %vm134, %v129, 0
    %v139 = vsel %vm134, %v131, 0
    %141 = vmatpush.bf16.xpose.msra.mxu0 0
    %142 = vmatpush.bf16.xpose.msra.mxu0 0
    %143 = vmatpush.bf16.xpose.msra.mxu0 0
    %144 = vmatpush.bf16.xpose.msra.mxu0 0
    %145 = vmatpush.bf16.xpose.msra.mxu0 0
    %146 = vmatpush.bf16.xpose.msra.mxu0 0
    %147 = vmatpush.bf16.xpose.msra.mxu0 0
    %148 = vmatpush.bf16.xpose.msra.mxu0 %v139
    %149 = vmatmul.bf16.gmra.mxu0 %v136
    %v150 = vpop.f32.mrf.mxu0
    %v151 = vadd.f32 0.0, %v150
    %v152 = vpop.f32.mrf.mxu0
    %153 = vdwg.mxu0
    %v154 = vsel %vm134, %v151, -inf
    %155 = vmax.xlane.f32.xlu0 %v154
    %v156 = vpop.xlane.xlu0 %155
    %v157 = vsub.f32 %v151, %v156
    %v158 = vmul.f32 %v157, 1.442695
    %v159 = vpow.pop %v158
    %v160 = vsel %vm134, %v159, 0.0
    %161 = vadd.xlane.f32.xlu0 %v160
    %v162 = vpop.xlane.xlu0 %161
    %v163 = vrcp.pop %v162
    %v164 = vmul.f32 %v159, %v163
    %v165 = vpack.c.bf16 %v164, %v164
    %v167 = vsel %vm134, %v165, 0
    %vm169 = vcmask 1043456
    %v171 = vsel %vm169, %v133, 0
    %173 = vmatpush.bf16.msra.mxu0 0
    %174 = vmatpush.bf16.msra.mxu0 0
    %175 = vmatpush.bf16.msra.mxu0 0
    %176 = vmatpush.bf16.msra.mxu0 0
    %177 = vmatpush.bf16.msra.mxu0 0
    %178 = vmatpush.bf16.msra.mxu0 0
    %179 = vmatpush.bf16.msra.mxu0 0
    %180 = vmatpush.bf16.msra.mxu0 %v171
    %181 = vmatmul.bf16.gmra.mxu0 %v167
    %v182 = vpop.f32.mrf.mxu0
    %v183 = vadd.f32 0.0, %v182
    %v184 = vpop.f32.mrf.mxu0
    %185 = vdwg.mxu0
    %186 = vst.msk [vmem:[#allocation3] sm:$0xf] %vm106, %v183
    %188 = vrot.lane.b32.xlu0 %v183, 8
    %v189 = vpop.permute.xlu0 %188
    %vm191 = vcmask 130116
    %192 = vst.msk [vmem:[#allocation3 - $0x4] sm:$0xf0] %vm191, %v189
    %s193 = scalar_lea.vmem [#allocation2], 24
    %vm194 = vcmask 64516
    %195 = vst.msk [vmem:[%s193 - $0x4] sm:$0xf0] %vm194, %v56
    %196 = vst.msk [vmem:[%s193 + $0x4] sm:$0xf0] %vm194, %v96
    %197 = vst.msk [vmem:[%s193 + $0xc] sm:$0xf0] %vm194, %v111
    %198 = vst.msk [vmem:[%s193] sm:$0xf0] %vm194, %v116
    %199 = vst.msk [vmem:[%s193 + $0x8] sm:$0xf0] %vm194, %v121
    %200 = vst.msk [vmem:[%s193 + $0x10] sm:$0xf0] %vm194, %v125
    %v201 = vld [vmem:[%s193] sm:$0xff]
    %v202 = vpack.c.bf16 %v201, %v201
    %v203 = vld [vmem:[%s193 + $0x8] sm:$0xff]
    %v204 = vpack.c.bf16 %v203, %v203
    %v205 = vld [vmem:[%s193 + $0x10] sm:$0xff]
    %v206 = vpack.c.bf16 %v205, %v205
    %v208 = vsel %vm134, %v202, 0
    %v211 = vsel %vm134, %v204, 0
    %213 = vmatpush.bf16.xpose.msra.mxu0 0
    %214 = vmatpush.bf16.xpose.msra.mxu0 0
    %215 = vmatpush.bf16.xpose.msra.mxu0 0
    %216 = vmatpush.bf16.xpose.msra.mxu0 0
    %217 = vmatpush.bf16.xpose.msra.mxu0 0
    %218 = vmatpush.bf16.xpose.msra.mxu0 0
    %219 = vmatpush.bf16.xpose.msra.mxu0 0
    %220 = vmatpush.bf16.xpose.msra.mxu0 %v211
    %221 = vmatmul.bf16.gmra.mxu0 %v208
    %v222 = vpop.f32.mrf.mxu0
    %v223 = vadd.f32 0.0, %v222
    %v224 = vpop.f32.mrf.mxu0
    %225 = vdwg.mxu0
    %v226 = vsel %vm134, %v223, -inf
    %227 = vmax.xlane.f32.xlu0 %v226
    %v228 = vpop.xlane.xlu0 %227
    %v229 = vsub.f32 %v223, %v228
    %v230 = vmul.f32 %v229, 1.442695
    %v231 = vpow.pop %v230
    %v232 = vsel %vm134, %v231, 0.0
    %233 = vadd.xlane.f32.xlu0 %v232
    %v234 = vpop.xlane.xlu0 %233
    %v235 = vrcp.pop %v234
    %v236 = vmul.f32 %v231, %v235
    %v237 = vpack.c.bf16 %v236, %v236
    %v239 = vsel %vm134, %v237, 0
    %v242 = vsel %vm169, %v206, 0
    %244 = vmatpush.bf16.msra.mxu0 0
    %245 = vmatpush.bf16.msra.mxu0 0
    %246 = vmatpush.bf16.msra.mxu0 0
    %247 = vmatpush.bf16.msra.mxu0 0
    %248 = vmatpush.bf16.msra.mxu0 0
    %249 = vmatpush.bf16.msra.mxu0 0
    %250 = vmatpush.bf16.msra.mxu0 0
    %251 = vmatpush.bf16.msra.mxu0 %v242
    %252 = vmatmul.bf16.gmra.mxu0 %v239
    %v253 = vpop.f32.mrf.mxu0
    %v254 = vadd.f32 0.0, %v253
    %v255 = vpop.f32.mrf.mxu0
    %256 = vdwg.mxu0
    %257 = vst.msk [vmem:[#allocation3 + $0x4] sm:$0xf] %vm106, %v254
    %259 = vrot.lane.b32.xlu0 %v254, 8
    %v260 = vpop.permute.xlu0 %259
    %262 = vst.msk [vmem:[#allocation3] sm:$0xf0] %vm191, %v260
    %s263 = scalar_lea.vmem [#allocation2], 48
    %264 = vst.msk [vmem:[%s263] sm:$0xf] %vm106, %v58
    %265 = vst.msk [vmem:[%s263 + $0x8] sm:$0xf] %vm106, %v97
    %267 = vrot.lane.b32.xlu0 %v105, 112
    %v268 = vpop.permute.xlu0 %267
    %270 = vst.msk [vmem:[%s263 + $0x10] sm:$0xf] %vm106, %v268
    %272 = vrot.lane.b32.xlu0 %v58, 120
    %v273 = vpop.permute.xlu0 %272
    %275 = vst.msk [vmem:[%s263 + $0x4] sm:$0xf] %vm106, %v273
    %277 = vrot.lane.b32.xlu0 %v97, 120
    %v278 = vpop.permute.xlu0 %277
    %280 = vst.msk [vmem:[%s263 + $0xc] sm:$0xf] %vm106, %v278
    %281 = vrot.lane.b32.xlu0 %v105, 104
    %v282 = vpop.permute.xlu0 %281
    %284 = vst.msk [vmem:[%s263 + $0x14] sm:$0xf] %vm106, %v282
    %v285 = vld [vmem:[%s263] sm:$0xff]
    %v286 = vpack.c.bf16 %v285, %v285
    %v287 = vld [vmem:[%s263 + $0x8] sm:$0xff]
    %v288 = vpack.c.bf16 %v287, %v287
    %v289 = vld [vmem:[%s263 + $0x10] sm:$0xff]
    %v290 = vpack.c.bf16 %v289, %v289
    %v292 = vsel %vm134, %v286, 0
    %v295 = vsel %vm134, %v288, 0
    %297 = vmatpush.bf16.xpose.msra.mxu0 0
    %298 = vmatpush.bf16.xpose.msra.mxu0 0
    %299 = vmatpush.bf16.xpose.msra.mxu0 0
    %300 = vmatpush.bf16.xpose.msra.mxu0 0
    %301 = vmatpush.bf16.xpose.msra.mxu0 0
    %302 = vmatpush.bf16.xpose.msra.mxu0 0
    %303 = vmatpush.bf16.xpose.msra.mxu0 0
    %304 = vmatpush.bf16.xpose.msra.mxu0 %v295
    %305 = vmatmul.bf16.gmra.mxu0 %v292
    %v306 = vpop.f32.mrf.mxu0
    %v307 = vadd.f32 0.0, %v306
    %v308 = vpop.f32.mrf.mxu0
    %309 = vdwg.mxu0
    %v310 = vsel %vm134, %v307, -inf
    %311 = vmax.xlane.f32.xlu0 %v310
    %v312 = vpop.xlane.xlu0 %311
    %v313 = vsub.f32 %v307, %v312
    %v314 = vmul.f32 %v313, 1.442695
    %v315 = vpow.pop %v314
    %v316 = vsel %vm134, %v315, 0.0
    %317 = vadd.xlane.f32.xlu0 %v316
    %v318 = vpop.xlane.xlu0 %317
    %v319 = vrcp.pop %v318
    %v320 = vmul.f32 %v315, %v319
    %v321 = vpack.c.bf16 %v320, %v320
    %v323 = vsel %vm134, %v321, 0
    %v326 = vsel %vm169, %v290, 0
    %328 = vmatpush.bf16.msra.mxu0 0
    %329 = vmatpush.bf16.msra.mxu0 0
    %330 = vmatpush.bf16.msra.mxu0 0
    %331 = vmatpush.bf16.msra.mxu0 0
    %332 = vmatpush.bf16.msra.mxu0 0
    %333 = vmatpush.bf16.msra.mxu0 0
    %334 = vmatpush.bf16.msra.mxu0 0
    %335 = vmatpush.bf16.msra.mxu0 %v326
    %336 = vmatmul.bf16.gmra.mxu0 %v323
    %v337 = vpop.f32.mrf.mxu0
    %v338 = vadd.f32 0.0, %v337
    %v339 = vpop.f32.mrf.mxu0
    %340 = vdwg.mxu0
    %341 = vst.msk [vmem:[#allocation3 + $0x8] sm:$0xf] %vm106, %v338
    %343 = vrot.lane.b32.xlu0 %v338, 8
    %v344 = vpop.permute.xlu0 %343
    %346 = vst.msk [vmem:[#allocation3 + $0x4] sm:$0xf0] %vm191, %v344
    %s347 = scalar_lea.vmem [#allocation2], 72
    %348 = vst.msk [vmem:[%s347 - $0x4] sm:$0xf0] %vm194, %v58
    %349 = vst.msk [vmem:[%s347 + $0x4] sm:$0xf0] %vm194, %v97
    %350 = vst.msk [vmem:[%s347 + $0xc] sm:$0xf0] %vm194, %v268
    %351 = vst.msk [vmem:[%s347] sm:$0xf0] %vm194, %v273
    %352 = vst.msk [vmem:[%s347 + $0x8] sm:$0xf0] %vm194, %v278
    %353 = vst.msk [vmem:[%s347 + $0x10] sm:$0xf0] %vm194, %v282
    %v354 = vld [vmem:[%s347] sm:$0xff]
    %v355 = vpack.c.bf16 %v354, %v354
    %v356 = vld [vmem:[%s347 + $0x8] sm:$0xff]
    %v357 = vpack.c.bf16 %v356, %v356
    %v358 = vld [vmem:[%s347 + $0x10] sm:$0xff]
    %v359 = vpack.c.bf16 %v358, %v358
    %v361 = vsel %vm134, %v355, 0
    %v364 = vsel %vm134, %v357, 0
    %366 = vmatpush.bf16.xpose.msra.mxu0 0
    %367 = vmatpush.bf16.xpose.msra.mxu0 0
    %368 = vmatpush.bf16.xpose.msra.mxu0 0
    %369 = vmatpush.bf16.xpose.msra.mxu0 0
    %370 = vmatpush.bf16.xpose.msra.mxu0 0
    %371 = vmatpush.bf16.xpose.msra.mxu0 0
    %372 = vmatpush.bf16.xpose.msra.mxu0 0
    %373 = vmatpush.bf16.xpose.msra.mxu0 %v364
    %374 = vmatmul.bf16.gmra.mxu0 %v361
    %v375 = vpop.f32.mrf.mxu0
    %v376 = vadd.f32 0.0, %v375
    %v377 = vpop.f32.mrf.mxu0
    %378 = vdwg.mxu0
    %v379 = vsel %vm134, %v376, -inf
    %380 = vmax.xlane.f32.xlu0 %v379
    %v381 = vpop.xlane.xlu0 %380
    %v382 = vsub.f32 %v376, %v381
    %v383 = vmul.f32 %v382, 1.442695
    %v384 = vpow.pop %v383
    %v385 = vsel %vm134, %v384, 0.0
    %386 = vadd.xlane.f32.xlu0 %v385
    %v387 = vpop.xlane.xlu0 %386
    %v388 = vrcp.pop %v387
    %v389 = vmul.f32 %v384, %v388
    %v390 = vpack.c.bf16 %v389, %v389
    %v392 = vsel %vm134, %v390, 0
    %v395 = vsel %vm169, %v359, 0
    %397 = vmatpush.bf16.msra.mxu0 0
    %398 = vmatpush.bf16.msra.mxu0 0
    %399 = vmatpush.bf16.msra.mxu0 0
    %400 = vmatpush.bf16.msra.mxu0 0
    %401 = vmatpush.bf16.msra.mxu0 0
    %402 = vmatpush.bf16.msra.mxu0 0
    %403 = vmatpush.bf16.msra.mxu0 0
    %404 = vmatpush.bf16.msra.mxu0 %v395
    %405 = vmatmul.bf16.gmra.mxu0 %v392
    %v406 = vpop.f32.mrf.mxu0
    %v407 = vadd.f32 0.0, %v406
    %v408 = vpop.f32.mrf.mxu0
    %409 = vdwg.mxu0
    %410 = vst.msk [vmem:[#allocation3 + $0xc] sm:$0xf] %vm106, %v407
    %412 = vrot.lane.b32.xlu0 %v407, 8
    %v413 = vpop.permute.xlu0 %412
    %415 = vst.msk [vmem:[#allocation3 + $0x8] sm:$0xf0] %vm191, %v413
    %v416 = vld [vmem:[#allocation3] sm:$0xff]
    %v417 = vld [vmem:[#allocation3 + $0x8] sm:$0xff]
    %v418 = vpack.c.bf16 %v417, %v416
    %v419 = vld [vmem:[%s2 + $0x20] sm:$0xf]
    %v420 = vld [vmem:[%s2 + $0x24] sm:$0xf]
    %v421 = vld [vmem:[%s3 + $0x3] sm:$0x1]
    %v422 = vperm.slane %v421, 0
    %v425 = vunpack.c.l.b16 %v419
    %v426 = vunpack.c.l.b16 %v420
    %v427 = vpack.c.b16 %v426, %v425
    %vm429 = vcmask 130048
    %v431 = vsel %vm429, %v418, 0
    %433 = vmatpush.bf16.msra.mxu0 0
    %434 = vmatpush.bf16.msra.mxu0 0
    %435 = vmatpush.bf16.msra.mxu0 0
    %436 = vmatpush.bf16.msra.mxu0 0
    %437 = vmatpush.bf16.msra.mxu0 0
    %438 = vmatpush.bf16.msra.mxu0 0
    %439 = vmatpush.bf16.msra.mxu0 0
    %440 = vmatpush.bf16.msra.mxu0 %v427
    %441 = vmatmul.bf16.gmra.mxu0 %v431
    %v442 = vpop.f32.mrf.mxu0
    %v443 = vadd.f32 %v422, %v442
    %v444 = vpop.f32.mrf.mxu0
    %v445 = vadd.f32 %v422, %v444
    %446 = vdwg.mxu0
    %v447 = vadd.f32 %v21, %v443
    %v448 = vadd.f32 %v22, %v445
    %v449 = vsel %vm42, %v447, 0.0
    %450 = vadd.xlane.f32.xlu0 %v449
    %v451 = vpop.xlane.xlu0 %450
    %v452 = vrot.slane %v451, 4
    %v453 = vadd.f32 %v451, %v452
    %v454 = vrot.slane %v453, 2
    %v455 = vadd.f32 %v453, %v454
    %v456 = vrot.slane %v455, 1
    %v457 = vadd.f32 %v455, %v456
    %s458 = vtos %v457
    %s459 = smul.f32 %s458, 0.00390625
    %v460 = vstv %s459
    %v461 = vsub.f32 %v447, %v460
    %v462 = vmul.f32 %v461, %v461
    %v463 = vsel %vm42, %v462, 0.0
    %464 = vadd.xlane.f32.xlu0 %v463
    %v465 = vpop.xlane.xlu0 %464
    %v466 = vrot.slane %v465, 4
    %v467 = vadd.f32 %v465, %v466
    %v468 = vrot.slane %v467, 2
    %v469 = vadd.f32 %v467, %v468
    %v470 = vrot.slane %v469, 1
    %v471 = vadd.f32 %v469, %v470
    %s472 = vtos %v471
    %s473 = smul.f32 %s472, 0.00390625
    %s474 = sadd.f32 %s473, 1e-05
    %v475 = vstv %s474
    %v476 = vrsqrt.pop %v475
    %v477 = vmul.f32 %v476, %v475
    %v478 = vmul.f32 %v477, %v476
    %v479 = vmul.f32 0.5, %v478
    %v480 = vsub.f32 1.5, %v479
    %v481 = vmul.f32 %v476, %v480
    %vm482 = vweird.f32 %v475
    %vm483 = vweird.f32 %v476
    %vm484 = vmor %vm482, %vm483
    %v485 = vsel %vm484, %v476, %v481
    %s486 = vtos %v485
    %v487 = vstv %s486
    %v488 = vmul.f32 %v461, %v487
    %v489 = vsel %vm42, %v448, 0.0
    %490 = vadd.xlane.f32.xlu0 %v489
    %v491 = vpop.xlane.xlu0 %490
    %v492 = vrot.slane %v491, 4
    %v493 = vadd.f32 %v491, %v492
    %v494 = vrot.slane %v493, 2
    %v495 = vadd.f32 %v493, %v494
    %v496 = vrot.slane %v495, 1
    %v497 = vadd.f32 %v495, %v496
    %s498 = vtos %v497
    %s499 = smul.f32 %s498, 0.00390625
    %v500 = vstv %s499
    %v501 = vsub.f32 %v448, %v500
    %v502 = vmul.f32 %v501, %v501
    %v503 = vsel %vm42, %v502, 0.0
    %504 = vadd.xlane.f32.xlu0 %v503
    %v505 = vpop.xlane.xlu0 %504
    %v506 = vrot.slane %v505, 4
    %v507 = vadd.f32 %v505, %v506
    %v508 = vrot.slane %v507, 2
    %v509 = vadd.f32 %v507, %v508
    %v510 = vrot.slane %v509, 1
    %v511 = vadd.f32 %v509, %v510
    %s512 = vtos %v511
    %s513 = smul.f32 %s512, 0.00390625
    %s514 = sadd.f32 %s513, 1e-05
    %v515 = vstv %s514
    %v516 = vrsqrt.pop %v515
    %v517 = vmul.f32 %v516, %v515
    %v518 = vmul.f32 %v517, %v516
    %v519 = vmul.f32 0.5, %v518
    %v520 = vsub.f32 1.5, %v519
    %v521 = vmul.f32 %v516, %v520
    %vm522 = vweird.f32 %v515
    %vm523 = vweird.f32 %v516
    %vm524 = vmor %vm522, %vm523
    %v525 = vsel %vm524, %v516, %v521
    %s526 = vtos %v525
    %v527 = vstv %s526
    %v528 = vmul.f32 %v501, %v527
    %v529 = vpack.c.bf16 %v528, %v488
    %v530 = vld [vmem:[%s2 + $0x28] sm:$0xf]
    %v531 = vld [vmem:[%s2 + $0x2c] sm:$0xf]
    %v532 = vld [vmem:[%s2 + $0x30] sm:$0xf]
    %v533 = vld [vmem:[%s2 + $0x34] sm:$0xf]
    %v534 = vld [vmem:[%s3 + $0x4] sm:$0x1]
    %v535 = vperm.slane %v534, 0
    %v540 = vunpack.c.l.b16 %v530
    %v541 = vunpack.c.l.b16 %v531
    %v542 = vunpack.c.l.b16 %v532
    %v543 = vunpack.c.l.b16 %v533
    %v544 = vpack.c.b16 %v541, %v540
    %v545 = vpack.c.b16 %v543, %v542
    %v549 = vsel %vm42, %v529, 0
    %551 = vmatpush.bf16.msra.mxu0 0
    %552 = vmatpush.bf16.msra.mxu0 0
    %553 = vmatpush.bf16.msra.mxu0 0
    %554 = vmatpush.bf16.msra.mxu0 0
    %555 = vmatpush.bf16.msra.mxu0 0
    %556 = vmatpush.bf16.msra.mxu0 0
    %557 = vmatpush.bf16.msra.mxu0 %v545
    %558 = vmatpush.bf16.msra.mxu0 %v544
    %559 = vmatmul.bf16.gmra.mxu0 %v549
    %v560 = vpop.f32.mrf.mxu0
    %v561 = vadd.f32 %v535, %v560
    %v562 = vpop.f32.mrf.mxu0
    %v563 = vadd.f32 %v535, %v562
    %564 = vdwg.mxu0
    %v565 = vmul.f32 %v561, 0.5
    %v566 = vmul.f32 %v563, 0.5
    %v567 = vmul.f32 %v561, 0.044715
    %v568 = vmul.f32 %v563, 0.044715
    %v569 = vmul.f32 %v567, %v561
    %v570 = vmul.f32 %v568, %v563
    %v571 = vmul.f32 %v569, %v561
    %v572 = vmul.f32 %v570, %v563
    %v573 = vadd.f32 %v561, %v571
    %v574 = vadd.f32 %v563, %v572
    %v575 = vmul.f32 %v573, 0.7978846
    %v576 = vmul.f32 %v574, 0.7978846
    %v577 = vtanh.pop %v575
    %v578 = vtanh.pop %v576
    %v579 = vadd.f32 %v577, 1.0
    %v580 = vadd.f32 %v578, 1.0
    %v581 = vmul.f32 %v565, %v579
    %v582 = vmul.f32 %v566, %v580
    %v583 = vpack.c.bf16 %v582, %v581
    %v584 = vld [vmem:[%s2 + $0x38] sm:$0xf]
    %v585 = vld [vmem:[%s2 + $0x3c] sm:$0xf]
    %v586 = vld [vmem:[%s2 + $0x40] sm:$0xf]
    %v587 = vld [vmem:[%s2 + $0x44] sm:$0xf]
    %v588 = vld [vmem:[%s3 + $0x5] sm:$0x1]
    %v589 = vperm.slane %v588, 0
    %v594 = vunpack.c.l.b16 %v584
    %v595 = vunpack.c.l.b16 %v585
    %v596 = vunpack.c.l.b16 %v586
    %v597 = vunpack.c.l.b16 %v587
    %v598 = vpack.c.b16 %v595, %v594
    %v599 = vpack.c.b16 %v597, %v596
    %v603 = vsel %vm42, %v583, 0
    %605 = vmatpush.bf16.msra.mxu0 0
    %606 = vmatpush.bf16.msra.mxu0 0
    %607 = vmatpush.bf16.msra.mxu0 0
    %608 = vmatpush.bf16.msra.mxu0 0
    %609 = vmatpush.bf16.msra.mxu0 0
    %610 = vmatpush.bf16.msra.mxu0 0
    %611 = vmatpush.bf16.msra.mxu0 %v599
    %612 = vmatpush.bf16.msra.mxu0 %v598
    %613 = vmatmul.bf16.gmra.mxu0 %v603
    %v614 = vpop.f32.mrf.mxu0
    %v615 = vadd.f32 %v589, %v614
    %v616 = vpop.f32.mrf.mxu0
    %v617 = vadd.f32 %v589, %v616
    %618 = vdwg.mxu0
    %v619 = vadd.f32 %v488, %v615
    %v620 = vadd.f32 %v528, %v617
    %v621 = vsel %vm42, %v619, 0.0
    %622 = vadd.xlane.f32.xlu0 %v621
    %v623 = vpop.xlane.xlu0 %622
    %v624 = vrot.slane %v623, 4
    %v625 = vadd.f32 %v623, %v624
    %v626 = vrot.slane %v625, 2
    %v627 = vadd.f32 %v625, %v626
    %v628 = vrot.slane %v627, 1
    %v629 = vadd.f32 %v627, %v628
    %s630 = vtos %v629
    %s631 = smul.f32 %s630, 0.00390625
    %v632 = vstv %s631
    %v633 = vsub.f32 %v619, %v632
    %v634 = vmul.f32 %v633, %v633
    %v635 = vsel %vm42, %v634, 0.0
    %636 = vadd.xlane.f32.xlu0 %v635
    %v637 = vpop.xlane.xlu0 %636
    %v638 = vrot.slane %v637, 4
    %v639 = vadd.f32 %v637, %v638
    %v640 = vrot.slane %v639, 2
    %v641 = vadd.f32 %v639, %v640
    %v642 = vrot.slane %v641, 1
    %v643 = vadd.f32 %v641, %v642
    %s644 = vtos %v643
    %s645 = smul.f32 %s644, 0.00390625
    %s646 = sadd.f32 %s645, 1e-05
    %v647 = vstv %s646
    %v648 = vrsqrt.pop %v647
    %v649 = vmul.f32 %v648, %v647
    %v650 = vmul.f32 %v649, %v648
    %v651 = vmul.f32 0.5, %v650
    %v652 = vsub.f32 1.5, %v651
    %v653 = vmul.f32 %v648, %v652
    %vm654 = vweird.f32 %v647
    %vm655 = vweird.f32 %v648
    %vm656 = vmor %vm654, %vm655
    %v657 = vsel %vm656, %v648, %v653
    %s658 = vtos %v657
    %v659 = vstv %s658
    %v660 = vmul.f32 %v633, %v659
    %v661 = vsel %vm42, %v620, 0.0
    %662 = vadd.xlane.f32.xlu0 %v661
    %v663 = vpop.xlane.xlu0 %662
    %v664 = vrot.slane %v663, 4
    %v665 = vadd.f32 %v663, %v664
    %v666 = vrot.slane %v665, 2
    %v667 = vadd.f32 %v665, %v666
    %v668 = vrot.slane %v667, 1
    %v669 = vadd.f32 %v667, %v668
    %s670 = vtos %v669
    %s671 = smul.f32 %s670, 0.00390625
    %v672 = vstv %s671
    %v673 = vsub.f32 %v620, %v672
    %v674 = vmul.f32 %v673, %v673
    %v675 = vsel %vm42, %v674, 0.0
    %676 = vadd.xlane.f32.xlu0 %v675
    %v677 = vpop.xlane.xlu0 %676
    %v678 = vrot.slane %v677, 4
    %v679 = vadd.f32 %v677, %v678
    %v680 = vrot.slane %v679, 2
    %v681 = vadd.f32 %v679, %v680
    %v682 = vrot.slane %v681, 1
    %v683 = vadd.f32 %v681, %v682
    %s684 = vtos %v683
    %s685 = smul.f32 %s684, 0.00390625
    %s686 = sadd.f32 %s685, 1e-05
    %v687 = vstv %s686
    %v688 = vrsqrt.pop %v687
    %v689 = vmul.f32 %v688, %v687
    %v690 = vmul.f32 %v689, %v688
    %v691 = vmul.f32 0.5, %v690
    %v692 = vsub.f32 1.5, %v691
    %v693 = vmul.f32 %v688, %v692
    %vm694 = vweird.f32 %v687
    %vm695 = vweird.f32 %v688
    %vm696 = vmor %vm694, %vm695
    %v697 = vsel %vm696, %v688, %v693
    %s698 = vtos %v697
    %v699 = vstv %s698
    %v700 = vmul.f32 %v673, %v699
    %v701 = vadd.f32 %v660, %v21
    %v702 = vadd.f32 %v700, %v22
    %703 = vst.msk [vmem:[#allocation4] sm:$0xff] %vm42, %v701
    %704 = vst.msk [vmem:[#allocation4 + $0x8] sm:$0xff] %vm42, %v702
    // Predicated region
    $region18: #{decoder_forward.1} parent=1 // pred_check
      _
    $region19: #{decoder_forward.1} parent=1 // pred_check_branch
      %706 = sbr.rel (0) target = $region21
    $region20: #{decoder_forward.1} parent=1 // pred_region
      %708 = vsyncadd [#allocation5], 0
      %s709 = sshll.u32 [#allocation4], 4
      %s710 = int_to_ptr.vmem [resolvable:$true] %s709
      %s711 = sshll.u32 %s4, 4
      %s712 = int_to_ptr.hbm [resolvable:$true] %s711
      %717 = dma.vmem_to_hbm [thread:$0]  %s710, 256, %s712, [#allocation5], 128, 128, 8
    $region21: #{decoder_forward.1} parent=1 // pred_fallthru
      _
    // Predicated region
    $region22: #{decoder_forward.1} parent=1 // pred_check
      _
    $region23: #{decoder_forward.1} parent=1 // pred_check_branch
      %719 = sbr.rel (0) target = $region25
    $region24: #{decoder_forward.1} parent=1 // pred_region
      %721 = dma.done [#allocation5], 256
    $region25: #{decoder_forward.1} parent=1 // pred_fallthru
      _
    %722 = vsyncpa [#allocation5], 1

</llo_original>
